<compile_context>
chip_gen: v5e
topology: v5e:2x2
jax: 0.10.0
libtpu: 0.0.40
codegen_flags: <defaults>
</compile_context>

<pallas_src>
import functools

import jax
import jax.numpy as jnp
import numpy as np
from jax.experimental import pallas as pl
from jax.experimental.pallas import tpu as pltpu

LANE = 128  # TPU lane width; every feature dim is zero-padded to this.


# ---------------------------------------------------------------------------
# Fused kernel: encoder -> rsample -> decoder for one path per grid point.
# path 0 = text -> motion, path 1 = motion -> motion.
# ---------------------------------------------------------------------------
def _temos_path_kernel(x_ref, in_len_ref, out_len_ref, eps_ref,
                       w_in_ref, b_in_ref, w_head_ref, b_head_ref,
                       pos_ref, w1_ref, b1_ref, w2_ref, b2_ref,
                       pred_ref, mu_ref, scale_ref, lat_ref):
    B, T_in, F = x_ref.shape
    T_out, L = pos_ref.shape
    P = w2_ref.shape[1]

    # ---- encoder: flattened 2D MXU matmul (B*T_in, F) @ (F, L) -------------
    x2d = x_ref[...].reshape(B * T_in, F)
    h = jnp.dot(x2d, w_in_ref[...], preferred_element_type=jnp.float32)
    h = jnp.maximum(h + b_in_ref[...], 0.0)            # (1, L) row-broadcast
    h = h.reshape(B, T_in, L)

    # ---- length-masked mean pool; mask built once as (B, T, 1) -------------
    in_len = in_len_ref[...]                           # (B, 1) int32
    t_in = jax.lax.broadcasted_iota(jnp.int32, (B, T_in), 1)
    in_mask = (t_in < in_len).astype(jnp.float32)[:, :, None]
    inv_len = pl.reciprocal(jnp.maximum(in_len.astype(jnp.float32), 1.0),
                            approx=True)               # EUP, zero-len guarded
    pooled = jnp.sum(h * in_mask, axis=1) * inv_len    # (B, L)

    # ---- fused mu|logvar head: one (L, 2L) matmul, split in-register -------
    stats = jnp.dot(pooled, w_head_ref[...],
                    preferred_element_type=jnp.float32) + b_head_ref[...]
    mu = stats[:, :L]
    scale = jnp.exp(0.5 * stats[:, L:])

    # ---- rsample: eps supplied as input (fact / sample_mean folded in) -----
    latent = mu + scale * eps_ref[...]
    mu_ref[...] = mu
    scale_ref[...] = scale
    lat_ref[...] = latent

    # ---- decoder: latent + positional queries -> MLP (flattened matmuls) ---
    q = latent[:, None, :] + pos_ref[...][None, :, :]  # (B, T_out, L)
    h2 = jnp.dot(q.reshape(B * T_out, L), w1_ref[...],
                 preferred_element_type=jnp.float32)
    h2 = jnp.maximum(h2 + b1_ref[...], 0.0)
    out2d = jnp.dot(h2, w2_ref[...],
                    preferred_element_type=jnp.float32) + b2_ref[...]

    out_len = out_len_ref[...]                         # (B, 1) int32
    t_out = jax.lax.broadcasted_iota(jnp.int32, (B, T_out), 1)
    out_mask = (t_out < out_len).astype(jnp.float32)[:, :, None]
    pred_ref[...] = out2d.reshape(B, T_out, P) * out_mask


# ---------------------------------------------------------------------------
# Parameter packing: zero-pad to 128 lanes, stack encoders along a path axis,
# fuse mu/logvar heads.  Zero padding preserves the real-dim results exactly.
# ---------------------------------------------------------------------------
def _pad_axis(x, axis, target):
    pad = target - x.shape[axis]
    if pad <= 0:
        return x
    widths = [(0, 0)] * x.ndim
    widths[axis] = (0, pad)
    return jnp.pad(x, widths)


def pack_params(params):
    def enc(p):
        w_in = _pad_axis(_pad_axis(p["w_in"], 0, LANE), 1, LANE)
        b_in = _pad_axis(p["b_in"], 1, LANE)
        w_mu = _pad_axis(_pad_axis(p["w_mu"], 0, LANE), 1, LANE)
        w_lv = _pad_axis(_pad_axis(p["w_lv"], 0, LANE), 1, LANE)
        b_mu = _pad_axis(p["b_mu"], 1, LANE)
        b_lv = _pad_axis(p["b_lv"], 1, LANE)
        return (w_in, b_in,
                jnp.concatenate([w_mu, w_lv], axis=1),   # (128, 256)
                jnp.concatenate([b_mu, b_lv], axis=1))   # (1, 256)

    te = enc(params["textencoder"])
    me = enc(params["motionencoder"])
    dec = params["motiondecoder"]
    return {
        "w_in":   jnp.stack([te[0], me[0]]),             # (2, 128, 128)
        "b_in":   jnp.stack([te[1], me[1]]),             # (2, 1, 128)
        "w_head": jnp.stack([te[2], me[2]]),             # (2, 128, 256)
        "b_head": jnp.stack([te[3], me[3]]),             # (2, 1, 256)
        "pos": _pad_axis(dec["pos"], 1, LANE),           # (T_out, 128)
        "w1": _pad_axis(_pad_axis(dec["w1"], 0, LANE), 1, LANE),
        "b1": _pad_axis(dec["b1"], 1, LANE),
        "w2": _pad_axis(_pad_axis(dec["w2"], 0, LANE), 1, LANE),
        "b2": _pad_axis(dec["b2"], 1, LANE),
    }


# ---------------------------------------------------------------------------
# TEMOSNet forward (vae=True path) — one pallas_call total.
# ---------------------------------------------------------------------------
def temos_forward(batch, packed, rng, *, latent_dim, pose_dim,
                  fact=None, sample_mean=False):
    text = batch["text_emb"]
    motion = batch["datastruct"]
    B = text.shape[0]
    T_in = max(text.shape[1], motion.shape[1])
    T_out = packed["pos"].shape[0]

    # Stack the two encoder paths (zero-padded timesteps are masked away).
    x_stack = jnp.stack([
        _pad_axis(_pad_axis(text, 1, T_in), 2, LANE),
        _pad_axis(_pad_axis(motion, 1, T_in), 2, LANE),
    ])                                                    # (2, B, T_in, 128)
    in_lens = jnp.stack([batch["text_lengths"],
                         batch["motion_lengths"]]).astype(jnp.int32)  # (2,B,1)
    out_len = batch["motion_lengths"].astype(jnp.int32)   # (B, 1)

    # rsample noise; sample_from_distribution semantics folded into eps:
    #   sample_mean      -> eps = 0                (returns loc)
    #   fact is not None -> loc + fact*(rsample-loc) == loc + scale*(fact*eps)
    eps = jax.random.normal(rng, (2, B, LANE), jnp.float32)
    if sample_mean:
        eps = jnp.zeros_like(eps)
    elif fact is not None:
        eps = fact * eps

    pred, mu, scale, latent = pl.pallas_call(
        _temos_path_kernel,
        grid=(2,),
        out_shape=(
            jax.ShapeDtypeStruct((2, B, T_out, LANE), jnp.float32),  # pred
            jax.ShapeDtypeStruct((2, B, LANE), jnp.float32),         # mu
            jax.ShapeDtypeStruct((2, B, LANE), jnp.float32),         # scale
            jax.ShapeDtypeStruct((2, B, LANE), jnp.float32),         # latent
        ),
        in_specs=[
            pl.BlockSpec((None, B, T_in, LANE), lambda p: (p, 0, 0, 0)),  # x
            pl.BlockSpec((None, B, 1), lambda p: (p, 0, 0)),        # enc lens
            pl.BlockSpec((B, 1), lambda p: (0, 0)),                 # dec lens
            pl.BlockSpec((None, B, LANE), lambda p: (p, 0, 0)),     # eps
            pl.BlockSpec((None, LANE, LANE), lambda p: (p, 0, 0)),  # w_in
            pl.BlockSpec((None, 1, LANE), lambda p: (p, 0, 0)),     # b_in
            pl.BlockSpec((None, LANE, 2 * LANE), lambda p: (p, 0, 0)),  # w_head
            pl.BlockSpec((None, 1, 2 * LANE), lambda p: (p, 0, 0)),     # b_head
            pl.BlockSpec((T_out, LANE), lambda p: (0, 0)),          # pos
            pl.BlockSpec((LANE, LANE), lambda p: (0, 0)),           # w1
            pl.BlockSpec((1, LANE), lambda p: (0, 0)),              # b1
            pl.BlockSpec((LANE, LANE), lambda p: (0, 0)),           # w2
            pl.BlockSpec((1, LANE), lambda p: (0, 0)),              # b2
        ],
        out_specs=(
            pl.BlockSpec((None, B, T_out, LANE), lambda p: (p, 0, 0, 0)),
            pl.BlockSpec((None, B, LANE), lambda p: (p, 0, 0)),
            pl.BlockSpec((None, B, LANE), lambda p: (p, 0, 0)),
            pl.BlockSpec((None, B, LANE), lambda p: (p, 0, 0)),
        ),
        compiler_params=pltpu.CompilerParams(
            dimension_semantics=("parallel",)),
    )(x_stack, in_lens, out_len, eps,
      packed["w_in"], packed["b_in"], packed["w_head"], packed["b_head"],
      packed["pos"], packed["w1"], packed["b1"], packed["w2"], packed["b2"])

    L, P = latent_dim, pose_dim
    mu_t, sc_t = mu[0, :, :L], scale[0, :, :L]
    mu_m, sc_m = mu[1, :, :L], scale[1, :, :L]
    return {
        "pred_data": pred[0, :, :, :P],
        "pred_m2m": pred[1, :, :, :P],
        "gt_data": batch["datastruct"],
        "dist_text": (mu_t, sc_t),
        "dist_motion": (mu_m, sc_m),
        "dist_gt": (jnp.zeros_like(mu_t), jnp.ones_like(sc_t)),
        "latent_text": latent[0, :, :L],
        "latent_motion": latent[1, :, :L],
    }


# ---------------------------------------------------------------------------
# Deterministic parameter construction (real, unpadded dims)
# ---------------------------------------------------------------------------
def _init_encoder(key, in_dim, latent_dim):
    ks = jax.random.split(key, 3)
    s_in = 1.0 / jnp.sqrt(in_dim)
    s_l = 1.0 / jnp.sqrt(latent_dim)
    return {
        "w_in": jax.random.normal(ks[0], (in_dim, latent_dim), jnp.float32) * s_in,
        "b_in": jnp.zeros((1, latent_dim), jnp.float32),
        "w_mu": jax.random.normal(ks[1], (latent_dim, latent_dim), jnp.float32) * s_l,
        "b_mu": jnp.zeros((1, latent_dim), jnp.float32),
        "w_lv": jax.random.normal(ks[2], (latent_dim, latent_dim), jnp.float32) * s_l,
        "b_lv": jnp.zeros((1, latent_dim), jnp.float32),
    }


def _sinusoidal_pe(T, D):
    pos = jnp.arange(T, dtype=jnp.float32)[:, None]
    i = jnp.arange(D, dtype=jnp.float32)[None, :]
    angle = pos / jnp.power(10000.0, (2.0 * jnp.floor(i / 2.0)) / D)
    return jnp.where((jnp.arange(D) % 2) == 0, jnp.sin(angle), jnp.cos(angle))


def _init_decoder(key, latent_dim, hidden, pose_dim, T):
    ks = jax.random.split(key, 2)
    return {
        "pos": _sinusoidal_pe(T, latent_dim).astype(jnp.float32),
        "w1": jax.random.normal(ks[0], (latent_dim, hidden), jnp.float32)
              / jnp.sqrt(latent_dim),
        "b1": jnp.zeros((1, hidden), jnp.float32),
        "w2": jax.random.normal(ks[1], (hidden, pose_dim), jnp.float32)
              / jnp.sqrt(hidden),
        "b2": jnp.zeros((1, pose_dim), jnp.float32),
    }


# ---------------------------------------------------------------------------
# Pure-JAX reference (same synthetic submodules, unpadded dims)
# ---------------------------------------------------------------------------
def _ref_encoder(x, lens, p):
    h = jnp.maximum(jnp.einsum("btf,fl->btl", x, p["w_in"]) + p["b_in"], 0.0)
    mask = (jnp.arange(x.shape[1])[None, :] < lens).astype(jnp.float32)[:, :, None]
    pooled = (h * mask).sum(axis=1) / jnp.maximum(lens.astype(jnp.float32), 1.0)
    mu = pooled @ p["w_mu"] + p["b_mu"]
    scale = jnp.exp(0.5 * (pooled @ p["w_lv"] + p["b_lv"]))
    return mu, scale


def _ref_decoder(z, lens, p):
    q = z[:, None, :] + p["pos"][None, :, :]
    h = jnp.maximum(jnp.einsum("btl,lh->bth", q, p["w1"]) + p["b1"], 0.0)
    out = jnp.einsum("bth,hp->btp", h, p["w2"]) + p["b2"]
    mask = (jnp.arange(out.shape[1])[None, :] < lens).astype(jnp.float32)[:, :, None]
    return out * mask


if __name__ == "__main__":
    B, T_TEXT, D_TEXT = 2, 8, 32
    T_MOTION, POSE_DIM = 8, 16
    LATENT, HIDDEN = 32, 32

    root = jax.random.PRNGKey(0)
    k_txt, k_mot, k_ptxt, k_pmot, k_pdec, k_fwd = jax.random.split(root, 6)

    batch = {
        "text_emb": jax.random.normal(k_txt, (B, T_TEXT, D_TEXT), jnp.float32),
        "datastruct": jax.random.normal(k_mot, (B, T_MOTION, POSE_DIM), jnp.float32),
        "text_lengths": jnp.array([[8], [6]], jnp.int32),
        "motion_lengths": jnp.array([[8], [5]], jnp.int32),
    }

    params = {
        "textencoder": _init_encoder(k_ptxt, D_TEXT, LATENT),
        "motionencoder": _init_encoder(k_pmot, POSE_DIM, LATENT),
        "motiondecoder": _init_decoder(k_pdec, LATENT, HIDDEN, POSE_DIM, T_MOTION),
    }
    packed = pack_params(params)

    fwd = jax.jit(functools.partial(temos_forward,
                                    latent_dim=LATENT, pose_dim=POSE_DIM))
    out = fwd(batch, packed, k_fwd)
    jax.tree_util.tree_map(jax.block_until_ready, out)

    # ---- correctness check vs pure-JAX reference ---------------------------
    eps = jax.random.normal(k_fwd, (2, B, LANE), jnp.float32)
    mu_t, sc_t = _ref_encoder(batch["text_emb"], batch["text_lengths"],
                              params["textencoder"])
    lat_t = mu_t + sc_t * eps[0, :, :LATENT]
    pred_t = _ref_decoder(lat_t, batch["motion_lengths"], params["motiondecoder"])
    mu_m, sc_m = _ref_encoder(batch["datastruct"], batch["motion_lengths"],
                              params["motionencoder"])
    lat_m = mu_m + sc_m * eps[1, :, :LATENT]
    pred_m = _ref_decoder(lat_m, batch["motion_lengths"], params["motiondecoder"])

    tol = dict(atol=5e-2, rtol=5e-2)   # loose: in-kernel approx reciprocal
    np.testing.assert_allclose(out["dist_text"][0], mu_t, **tol)
    np.testing.assert_allclose(out["dist_text"][1], sc_t, **tol)
    np.testing.assert_allclose(out["latent_text"], lat_t, **tol)
    np.testing.assert_allclose(out["pred_data"], pred_t, **tol)
    np.testing.assert_allclose(out["dist_motion"][0], mu_m, **tol)
    np.testing.assert_allclose(out["latent_motion"], lat_m, **tol)
    np.testing.assert_allclose(out["pred_m2m"], pred_m, **tol)

    assert out["pred_data"].shape == (B, T_MOTION, POSE_DIM)
    assert out["pred_m2m"].shape == (B, T_MOTION, POSE_DIM)
    assert out["latent_text"].shape == (B, LATENT)
    assert out["dist_text"][0].shape == (B, LATENT)
    print("KERNEL_OK")
</pallas_src>

<mosaic_0001>
module attributes {stable_mosaic.version = 11 : i64} {
  func.func @_temos_path_kernel(%arg0: i32, %arg1: memref<1x2x8x128xf32, #tpu.memory_space<vmem>>, %arg2: memref<1x2x1xi32, #tpu.memory_space<vmem>>, %arg3: memref<2x1xi32, #tpu.memory_space<vmem>>, %arg4: memref<1x2x128xf32, #tpu.memory_space<vmem>>, %arg5: memref<1x128x128xf32, #tpu.memory_space<vmem>>, %arg6: memref<1x1x128xf32, #tpu.memory_space<vmem>>, %arg7: memref<1x128x256xf32, #tpu.memory_space<vmem>>, %arg8: memref<1x1x256xf32, #tpu.memory_space<vmem>>, %arg9: memref<8x128xf32, #tpu.memory_space<vmem>>, %arg10: memref<128x128xf32, #tpu.memory_space<vmem>>, %arg11: memref<1x128xf32, #tpu.memory_space<vmem>>, %arg12: memref<128x128xf32, #tpu.memory_space<vmem>>, %arg13: memref<1x128xf32, #tpu.memory_space<vmem>>, %arg14: memref<1x2x8x128xf32, #tpu.memory_space<vmem>>, %arg15: memref<1x2x128xf32, #tpu.memory_space<vmem>>, %arg16: memref<1x2x128xf32, #tpu.memory_space<vmem>>, %arg17: memref<1x2x128xf32, #tpu.memory_space<vmem>>) attributes {dimension_semantics = [#tpu.dimension_semantics<parallel>], iteration_bounds = array<i64: 2>, scalar_prefetch = 0 : i64, scratch_operands = 0 : i64, tpu.core_type = #tpu.core_type<tc>, window_params = [{transform_indices = @transform_0, window_bounds = array<i64: 1, 2, 8, 128>}, {transform_indices = @transform_1, window_bounds = array<i64: 1, 2, 1>}, {pipeline_mode = #tpu.pipeline_mode<synchronous>, transform_indices = @transform_2, window_bounds = array<i64: 2, 1>}, {transform_indices = @transform_3, window_bounds = array<i64: 1, 2, 128>}, {transform_indices = @transform_4, window_bounds = array<i64: 1, 128, 128>}, {transform_indices = @transform_5, window_bounds = array<i64: 1, 1, 128>}, {transform_indices = @transform_6, window_bounds = array<i64: 1, 128, 256>}, {transform_indices = @transform_7, window_bounds = array<i64: 1, 1, 256>}, {pipeline_mode = #tpu.pipeline_mode<synchronous>, transform_indices = @transform_8, window_bounds = array<i64: 8, 128>}, {pipeline_mode = #tpu.pipeline_mode<synchronous>, transform_indices = @transform_9, window_bounds = array<i64: 128, 128>}, {pipeline_mode = #tpu.pipeline_mode<synchronous>, transform_indices = @transform_10, window_bounds = array<i64: 1, 128>}, {pipeline_mode = #tpu.pipeline_mode<synchronous>, transform_indices = @transform_11, window_bounds = array<i64: 128, 128>}, {pipeline_mode = #tpu.pipeline_mode<synchronous>, transform_indices = @transform_12, window_bounds = array<i64: 1, 128>}, {transform_indices = @transform_13, window_bounds = array<i64: 1, 2, 8, 128>}, {transform_indices = @transform_14, window_bounds = array<i64: 1, 2, 128>}, {transform_indices = @transform_15, window_bounds = array<i64: 1, 2, 128>}, {transform_indices = @transform_16, window_bounds = array<i64: 1, 2, 128>}]} {
    %c0 = arith.constant 0 : index
    %c0_0 = arith.constant 0 : index
    %c0_1 = arith.constant 0 : index
    %c0_2 = arith.constant 0 : index
    %0 = vector.load %arg1[%c0, %c0_0, %c0_1, %c0_2] : memref<1x2x8x128xf32, #tpu.memory_space<vmem>>, vector<1x2x8x128xf32>
    %1 = vector.shape_cast %0 : vector<1x2x8x128xf32> to vector<2x8x128xf32>
    %2 = vector.shape_cast %1 : vector<2x8x128xf32> to vector<16x128xf32>
    %c0_3 = arith.constant 0 : index
    %c0_4 = arith.constant 0 : index
    %c0_5 = arith.constant 0 : index
    %3 = vector.load %arg5[%c0_3, %c0_4, %c0_5] : memref<1x128x128xf32, #tpu.memory_space<vmem>>, vector<1x128x128xf32>
    %4 = vector.shape_cast %3 : vector<1x128x128xf32> to vector<128x128xf32>
    %cst = arith.constant dense<0.000000e+00> : vector<16x128xf32>
    %5 = tpu.matmul %2, %4, %cst {dimension_numbers = #tpu.dot_dimension_numbers<[1], [0], [0], [1], [0, 0, 1, 1], [], []>} : vector<16x128xf32>, vector<128x128xf32>, vector<16x128xf32> -> vector<16x128xf32>
    %c0_6 = arith.constant 0 : index
    %c0_7 = arith.constant 0 : index
    %c0_8 = arith.constant 0 : index
    %6 = vector.load %arg6[%c0_6, %c0_7, %c0_8] : memref<1x1x128xf32, #tpu.memory_space<vmem>>, vector<1x1x128xf32>
    %7 = vector.shape_cast %6 : vector<1x1x128xf32> to vector<1x128xf32>
    %8 = vector.broadcast %7 : vector<1x128xf32> to vector<16x128xf32>
    %9 = arith.addf %5, %8 : vector<16x128xf32>
    %cst_9 = arith.constant 0.000000e+00 : f32
    %10 = vector.broadcast %cst_9 : f32 to vector<16x128xf32>
    %11 = arith.maximumf %9, %10 : vector<16x128xf32>
    %12 = vector.shape_cast %11 : vector<16x128xf32> to vector<2x8x128xf32>
    %c0_10 = arith.constant 0 : index
    %c0_11 = arith.constant 0 : index
    %c0_12 = arith.constant 0 : index
    %13 = vector.load %arg2[%c0_10, %c0_11, %c0_12] : memref<1x2x1xi32, #tpu.memory_space<vmem>>, vector<1x2x1xi32>
    %14 = vector.shape_cast %13 : vector<1x2x1xi32> to vector<2x1xi32>
    %15 = tpu.iota {dimensions = array<i32: 1>} : vector<2x8xi32>
    %16 = vector.broadcast %14 : vector<2x1xi32> to vector<2x8xi32>
    %17 = arith.cmpi slt, %15, %16 : vector<2x8xi32>
    %18 = arith.extui %17 : vector<2x8xi1> to vector<2x8xi32>
    %19 = arith.sitofp %18 : vector<2x8xi32> to vector<2x8xf32>
    %20 = vector.shape_cast %19 : vector<2x8xf32> to vector<2x8x1xf32>
    %21 = arith.sitofp %14 : vector<2x1xi32> to vector<2x1xf32>
    %cst_13 = arith.constant 1.000000e+00 : f32
    %22 = vector.broadcast %cst_13 : f32 to vector<2x1xf32>
    %23 = arith.maximumf %21, %22 : vector<2x1xf32>
    %24 = tpu.reciprocal %23 {approx = true} : vector<2x1xf32> -> vector<2x1xf32>
    %25 = vector.broadcast %20 : vector<2x8x1xf32> to vector<2x8x128xf32>
    %26 = arith.mulf %12, %25 : vector<2x8x128xf32>
    %cst_14 = arith.constant dense<0.000000e+00> : vector<2x128xf32>
    %27 = vector.multi_reduction <add>, %26, %cst_14 [1] : vector<2x8x128xf32> to vector<2x128xf32>
    %28 = vector.broadcast %24 : vector<2x1xf32> to vector<2x128xf32>
    %29 = arith.mulf %27, %28 : vector<2x128xf32>
    %c0_15 = arith.constant 0 : index
    %c0_16 = arith.constant 0 : index
    %c0_17 = arith.constant 0 : index
    %30 = vector.load %arg7[%c0_15, %c0_16, %c0_17] : memref<1x128x256xf32, #tpu.memory_space<vmem>>, vector<1x128x256xf32>
    %31 = vector.shape_cast %30 : vector<1x128x256xf32> to vector<128x256xf32>
    %cst_18 = arith.constant dense<0.000000e+00> : vector<2x256xf32>
    %32 = tpu.matmul %29, %31, %cst_18 {dimension_numbers = #tpu.dot_dimension_numbers<[1], [0], [0], [1], [0, 0, 1, 1], [], []>} : vector<2x128xf32>, vector<128x256xf32>, vector<2x256xf32> -> vector<2x256xf32>
    %c0_19 = arith.constant 0 : index
    %c0_20 = arith.constant 0 : index
    %c0_21 = arith.constant 0 : index
    %33 = vector.load %arg8[%c0_19, %c0_20, %c0_21] : memref<1x1x256xf32, #tpu.memory_space<vmem>>, vector<1x1x256xf32>
    %34 = vector.shape_cast %33 : vector<1x1x256xf32> to vector<1x256xf32>
    %35 = vector.broadcast %34 : vector<1x256xf32> to vector<2x256xf32>
    %36 = arith.addf %32, %35 : vector<2x256xf32>
    %37 = vector.extract_strided_slice %36 {offsets = [0, 0], sizes = [2, 128], strides = [1, 1]} : vector<2x256xf32> to vector<2x128xf32>
    %38 = vector.extract_strided_slice %36 {offsets = [0, 128], sizes = [2, 128], strides = [1, 1]} : vector<2x256xf32> to vector<2x128xf32>
    %cst_22 = arith.constant 5.000000e-01 : f32
    %39 = vector.broadcast %cst_22 : f32 to vector<2x128xf32>
    %40 = arith.mulf %39, %38 : vector<2x128xf32>
    %41 = math.exp %40 : vector<2x128xf32>
    %c0_23 = arith.constant 0 : index
    %c0_24 = arith.constant 0 : index
    %c0_25 = arith.constant 0 : index
    %42 = vector.load %arg4[%c0_23, %c0_24, %c0_25] : memref<1x2x128xf32, #tpu.memory_space<vmem>>, vector<1x2x128xf32>
    %43 = vector.shape_cast %42 : vector<1x2x128xf32> to vector<2x128xf32>
    %44 = arith.mulf %41, %43 : vector<2x128xf32>
    %45 = arith.addf %37, %44 : vector<2x128xf32>
    %c0_26 = arith.constant 0 : index
    %c0_27 = arith.constant 0 : index
    %c0_28 = arith.constant 0 : index
    %46 = vector.load %arg15[%c0_26, %c0_27, %c0_28] : memref<1x2x128xf32, #tpu.memory_space<vmem>>, vector<1x2x128xf32>
    %47 = vector.shape_cast %46 : vector<1x2x128xf32> to vector<2x128xf32>
    %48 = vector.shape_cast %37 : vector<2x128xf32> to vector<1x2x128xf32>
    tpu.vector_store %arg15[%c0_26, %c0_27, %c0_28], %48 {strides = array<i32>} : memref<1x2x128xf32, #tpu.memory_space<vmem>>, vector<1x2x128xf32>,
    %c0_29 = arith.constant 0 : index
    %c0_30 = arith.constant 0 : index
    %c0_31 = arith.constant 0 : index
    %49 = vector.load %arg16[%c0_29, %c0_30, %c0_31] : memref<1x2x128xf32, #tpu.memory_space<vmem>>, vector<1x2x128xf32>
    %50 = vector.shape_cast %49 : vector<1x2x128xf32> to vector<2x128xf32>
    %51 = vector.shape_cast %41 : vector<2x128xf32> to vector<1x2x128xf32>
    tpu.vector_store %arg16[%c0_29, %c0_30, %c0_31], %51 {strides = array<i32>} : memref<1x2x128xf32, #tpu.memory_space<vmem>>, vector<1x2x128xf32>,
    %c0_32 = arith.constant 0 : index
    %c0_33 = arith.constant 0 : index
    %c0_34 = arith.constant 0 : index
    %52 = vector.load %arg17[%c0_32, %c0_33, %c0_34] : memref<1x2x128xf32, #tpu.memory_space<vmem>>, vector<1x2x128xf32>
    %53 = vector.shape_cast %52 : vector<1x2x128xf32> to vector<2x128xf32>
    %54 = vector.shape_cast %45 : vector<2x128xf32> to vector<1x2x128xf32>
    tpu.vector_store %arg17[%c0_32, %c0_33, %c0_34], %54 {strides = array<i32>} : memref<1x2x128xf32, #tpu.memory_space<vmem>>, vector<1x2x128xf32>,
    %55 = vector.shape_cast %45 : vector<2x128xf32> to vector<2x1x128xf32>
    %c0_35 = arith.constant 0 : index
    %c0_36 = arith.constant 0 : index
    %56 = vector.load %arg9[%c0_35, %c0_36] : memref<8x128xf32, #tpu.memory_space<vmem>>, vector<8x128xf32>
    %57 = vector.shape_cast %56 : vector<8x128xf32> to vector<1x8x128xf32>
    %58 = vector.broadcast %55 : vector<2x1x128xf32> to vector<2x8x128xf32>
    %59 = vector.broadcast %57 : vector<1x8x128xf32> to vector<2x8x128xf32>
    %60 = arith.addf %58, %59 : vector<2x8x128xf32>
    %61 = vector.shape_cast %60 : vector<2x8x128xf32> to vector<16x128xf32>
    %c0_37 = arith.constant 0 : index
    %c0_38 = arith.constant 0 : index
    %62 = vector.load %arg10[%c0_37, %c0_38] : memref<128x128xf32, #tpu.memory_space<vmem>>, vector<128x128xf32>
    %cst_39 = arith.constant dense<0.000000e+00> : vector<16x128xf32>
    %63 = tpu.matmul %61, %62, %cst_39 {dimension_numbers = #tpu.dot_dimension_numbers<[1], [0], [0], [1], [0, 0, 1, 1], [], []>} : vector<16x128xf32>, vector<128x128xf32>, vector<16x128xf32> -> vector<16x128xf32>
    %c0_40 = arith.constant 0 : index
    %c0_41 = arith.constant 0 : index
    %64 = vector.load %arg11[%c0_40, %c0_41] : memref<1x128xf32, #tpu.memory_space<vmem>>, vector<1x128xf32>
    %65 = vector.broadcast %64 : vector<1x128xf32> to vector<16x128xf32>
    %66 = arith.addf %63, %65 : vector<16x128xf32>
    %cst_42 = arith.constant 0.000000e+00 : f32
    %67 = vector.broadcast %cst_42 : f32 to vector<16x128xf32>
    %68 = arith.maximumf %66, %67 : vector<16x128xf32>
    %c0_43 = arith.constant 0 : index
    %c0_44 = arith.constant 0 : index
    %69 = vector.load %arg12[%c0_43, %c0_44] : memref<128x128xf32, #tpu.memory_space<vmem>>, vector<128x128xf32>
    %cst_45 = arith.constant dense<0.000000e+00> : vector<16x128xf32>
    %70 = tpu.matmul %68, %69, %cst_45 {dimension_numbers = #tpu.dot_dimension_numbers<[1], [0], [0], [1], [0, 0, 1, 1], [], []>} : vector<16x128xf32>, vector<128x128xf32>, vector<16x128xf32> -> vector<16x128xf32>
    %c0_46 = arith.constant 0 : index
    %c0_47 = arith.constant 0 : index
    %71 = vector.load %arg13[%c0_46, %c0_47] : memref<1x128xf32, #tpu.memory_space<vmem>>, vector<1x128xf32>
    %72 = vector.broadcast %71 : vector<1x128xf32> to vector<16x128xf32>
    %73 = arith.addf %70, %72 : vector<16x128xf32>
    %c0_48 = arith.constant 0 : index
    %c0_49 = arith.constant 0 : index
    %74 = vector.load %arg3[%c0_48, %c0_49] : memref<2x1xi32, #tpu.memory_space<vmem>>, vector<2x1xi32>
    %75 = tpu.iota {dimensions = array<i32: 1>} : vector<2x8xi32>
    %76 = vector.broadcast %74 : vector<2x1xi32> to vector<2x8xi32>
    %77 = arith.cmpi slt, %75, %76 : vector<2x8xi32>
    %78 = arith.extui %77 : vector<2x8xi1> to vector<2x8xi32>
    %79 = arith.sitofp %78 : vector<2x8xi32> to vector<2x8xf32>
    %80 = vector.shape_cast %79 : vector<2x8xf32> to vector<2x8x1xf32>
    %81 = vector.shape_cast %73 : vector<16x128xf32> to vector<2x8x128xf32>
    %82 = vector.broadcast %80 : vector<2x8x1xf32> to vector<2x8x128xf32>
    %83 = arith.mulf %81, %82 : vector<2x8x128xf32>
    %c0_50 = arith.constant 0 : index
    %c0_51 = arith.constant 0 : index
    %c0_52 = arith.constant 0 : index
    %c0_53 = arith.constant 0 : index
    %84 = vector.load %arg14[%c0_50, %c0_51, %c0_52, %c0_53] : memref<1x2x8x128xf32, #tpu.memory_space<vmem>>, vector<1x2x8x128xf32>
    %85 = vector.shape_cast %84 : vector<1x2x8x128xf32> to vector<2x8x128xf32>
    %86 = vector.shape_cast %83 : vector<2x8x128xf32> to vector<1x2x8x128xf32>
    tpu.vector_store %arg14[%c0_50, %c0_51, %c0_52, %c0_53], %86 {strides = array<i32>} : memref<1x2x8x128xf32, #tpu.memory_space<vmem>>, vector<1x2x8x128xf32>,
    return
  }
  func.func @transform_0(%arg0: i32) -> (i32, i32, i32, i32) {
    %c0_i32 = arith.constant 0 : i32
    %c0_i32_0 = arith.constant 0 : i32
    %c0_i32_1 = arith.constant 0 : i32
    %c0_i32_2 = arith.constant 0 : i32
    return %arg0, %c0_i32, %c0_i32_0, %c0_i32_1 : i32, i32, i32, i32
  }
  func.func @transform_1(%arg0: i32) -> (i32, i32, i32) {
    %c0_i32 = arith.constant 0 : i32
    %c0_i32_0 = arith.constant 0 : i32
    %c0_i32_1 = arith.constant 0 : i32
    return %arg0, %c0_i32, %c0_i32_0 : i32, i32, i32
  }
  func.func @transform_2(%arg0: i32) -> (i32, i32) {
    %c0_i32 = arith.constant 0 : i32
    %c0_i32_0 = arith.constant 0 : i32
    %c0_i32_1 = arith.constant 0 : i32
    return %c0_i32, %c0_i32_0 : i32, i32
  }
  func.func @transform_3(%arg0: i32) -> (i32, i32, i32) {
    %c0_i32 = arith.constant 0 : i32
    %c0_i32_0 = arith.constant 0 : i32
    %c0_i32_1 = arith.constant 0 : i32
    return %arg0, %c0_i32, %c0_i32_0 : i32, i32, i32
  }
  func.func @transform_4(%arg0: i32) -> (i32, i32, i32) {
    %c0_i32 = arith.constant 0 : i32
    %c0_i32_0 = arith.constant 0 : i32
    %c0_i32_1 = arith.constant 0 : i32
    return %arg0, %c0_i32, %c0_i32_0 : i32, i32, i32
  }
  func.func @transform_5(%arg0: i32) -> (i32, i32, i32) {
    %c0_i32 = arith.constant 0 : i32
    %c0_i32_0 = arith.constant 0 : i32
    %c0_i32_1 = arith.constant 0 : i32
    return %arg0, %c0_i32, %c0_i32_0 : i32, i32, i32
  }
  func.func @transform_6(%arg0: i32) -> (i32, i32, i32) {
    %c0_i32 = arith.constant 0 : i32
    %c0_i32_0 = arith.constant 0 : i32
    %c0_i32_1 = arith.constant 0 : i32
    return %arg0, %c0_i32, %c0_i32_0 : i32, i32, i32
  }
  func.func @transform_7(%arg0: i32) -> (i32, i32, i32) {
    %c0_i32 = arith.constant 0 : i32
    %c0_i32_0 = arith.constant 0 : i32
    %c0_i32_1 = arith.constant 0 : i32
    return %arg0, %c0_i32, %c0_i32_0 : i32, i32, i32
  }
  func.func @transform_8(%arg0: i32) -> (i32, i32) {
    %c0_i32 = arith.constant 0 : i32
    %c0_i32_0 = arith.constant 0 : i32
    %c0_i32_1 = arith.constant 0 : i32
    return %c0_i32, %c0_i32_0 : i32, i32
  }
  func.func @transform_9(%arg0: i32) -> (i32, i32) {
    %c0_i32 = arith.constant 0 : i32
    %c0_i32_0 = arith.constant 0 : i32
    %c0_i32_1 = arith.constant 0 : i32
    return %c0_i32, %c0_i32_0 : i32, i32
  }
  func.func @transform_10(%arg0: i32) -> (i32, i32) {
    %c0_i32 = arith.constant 0 : i32
    %c0_i32_0 = arith.constant 0 : i32
    %c0_i32_1 = arith.constant 0 : i32
    return %c0_i32, %c0_i32_0 : i32, i32
  }
  func.func @transform_11(%arg0: i32) -> (i32, i32) {
    %c0_i32 = arith.constant 0 : i32
    %c0_i32_0 = arith.constant 0 : i32
    %c0_i32_1 = arith.constant 0 : i32
    return %c0_i32, %c0_i32_0 : i32, i32
  }
  func.func @transform_12(%arg0: i32) -> (i32, i32) {
    %c0_i32 = arith.constant 0 : i32
    %c0_i32_0 = arith.constant 0 : i32
    %c0_i32_1 = arith.constant 0 : i32
    return %c0_i32, %c0_i32_0 : i32, i32
  }
  func.func @transform_13(%arg0: i32) -> (i32, i32, i32, i32) {
    %c0_i32 = arith.constant 0 : i32
    %c0_i32_0 = arith.constant 0 : i32
    %c0_i32_1 = arith.constant 0 : i32
    %c0_i32_2 = arith.constant 0 : i32
    return %arg0, %c0_i32, %c0_i32_0, %c0_i32_1 : i32, i32, i32, i32
  }
  func.func @transform_14(%arg0: i32) -> (i32, i32, i32) {
    %c0_i32 = arith.constant 0 : i32
    %c0_i32_0 = arith.constant 0 : i32
    %c0_i32_1 = arith.constant 0 : i32
    return %arg0, %c0_i32, %c0_i32_0 : i32, i32, i32
  }
  func.func @transform_15(%arg0: i32) -> (i32, i32, i32) {
    %c0_i32 = arith.constant 0 : i32
    %c0_i32_0 = arith.constant 0 : i32
    %c0_i32_1 = arith.constant 0 : i32
    return %arg0, %c0_i32, %c0_i32_0 : i32, i32, i32
  }
  func.func @transform_16(%arg0: i32) -> (i32, i32, i32) {
    %c0_i32 = arith.constant 0 : i32
    %c0_i32_0 = arith.constant 0 : i32
    %c0_i32_1 = arith.constant 0 : i32
    return %arg0, %c0_i32, %c0_i32_0 : i32, i32, i32
  }
}

</mosaic_0001>

<llo_original>
// kernel: temos_forward.1
$region0: #{temos_forward.1}
  #allocation0 [shape = 'u32[]', space=smem, size = 0x4, offset = 0x4, fixed_abs, tag = 'smem constant byte address 0x4 - core index']
  #allocation1 [shape = 'u32[72,128]{1,0:T(1,128)}', space=vmem, size = 0x9000, scoped, tag = 'internal scratch']
  %s0 = inlined_call_operand.vmem [shape: f32[2,2,8,128], index: 0, kind: input, shape index: {}]
  %s1 = inlined_call_operand.vmem [shape: s32[2,2,1], index: 1, kind: input, shape index: {}]
  %s2 = inlined_call_operand.vmem [shape: s32[2,1], index: 2, kind: input, shape index: {}]
  %s3 = inlined_call_operand.vmem [shape: f32[2,2,128], index: 3, kind: input, shape index: {}]
  %s4 = inlined_call_operand.hbm [shape: f32[2,128,128], index: 4, kind: input, shape index: {}]
  %s5 = inlined_call_operand.vmem [shape: f32[2,1,128], index: 5, kind: input, shape index: {}]
  %s6 = inlined_call_operand.hbm [shape: f32[2,128,256], index: 6, kind: input, shape index: {}]
  %s7 = inlined_call_operand.vmem [shape: f32[2,1,256], index: 7, kind: input, shape index: {}]
  %s8 = inlined_call_operand.vmem [shape: f32[8,128], index: 8, kind: input, shape index: {}]
  %s9 = inlined_call_operand.hbm [shape: f32[128,128], index: 9, kind: input, shape index: {}]
  %s10 = inlined_call_operand.vmem [shape: f32[1,128], index: 10, kind: input, shape index: {}]
  %s11 = inlined_call_operand.hbm [shape: f32[128,128], index: 11, kind: input, shape index: {}]
  %s12 = inlined_call_operand.vmem [shape: f32[1,128], index: 12, kind: input, shape index: {}]
  %s13 = inlined_call_operand.vmem [shape: f32[2,2,8,128], index: 13, kind: output, shape index: {0}]
  %s14 = inlined_call_operand.vmem [shape: f32[2,2,128], index: 14, kind: output, shape index: {1}]
  %s15 = inlined_call_operand.vmem [shape: f32[2,2,128], index: 15, kind: output, shape index: {2}]
  %s16 = inlined_call_operand.vmem [shape: f32[2,2,128], index: 16, kind: output, shape index: {3}]
  %17 = xla_tuple %s13, %s14, %s15, %s16
  %s18 = sld [smem:[#allocation0]]
  $region125: #{temos_forward.1} parent=0
    _
  %s20 = ssub.s32 1, %s18
  %s21 = scalar_select 0, %s20, %s18
  $region1: #{temos_forward.1} parent=0
    #allocation2 [shape = 'u8[131072]{0}', space=vmem, size = 0x20000, scoped, tag = 'input window, operand 4']
    #allocation3 [shape = 's32[2]{0}', space=sflag, size = 0x8, scoped, tag = 'scoped memory for temos_forward.1']
    #allocation4 [shape = 'u8[262144]{0}', space=vmem, size = 0x40000, scoped, tag = 'input window, operand 6']
    #allocation5 [shape = 's32[2]{0}', space=sflag, size = 0x8, scoped, tag = 'scoped memory for temos_forward.1']
    #allocation6 [shape = 'u8[65536]{0}', space=vmem, size = 0x10000, scoped, tag = 'input window, operand 9, single buffered']
    #allocation7 [shape = 'u8[65536]{0}', space=vmem, size = 0x10000, scoped, tag = 'input window, operand 11, single buffered']
    #allocation8 [shape = 's32[1]{0}', space=sflag, size = 0x4, scoped, tag = 'scoped memory for temos_forward.1']
    %22 = vsyncpa [#allocation3], 0
    %s23 = scalar_lea.sflag [#allocation3], 1
    %24 = vsyncpa %s23, 0
    %25 = vsyncpa [#allocation5], 0
    %s26 = scalar_lea.sflag [#allocation5], 1
    %27 = vsyncpa %s26, 0
    %28 = vsyncpa [#allocation8], 0
    loop: start=0, step=1, limit=4
    $region2: #{temos_forward.1} parent=1 // loop_pre_header
      _
    $region3: #{temos_forward.1} parent=1 // loop_header
      %s30 = sphi 0, %s34
      %p31 = scmp.ge.s32.totalorder %s30, 4
      %s40 = sphi 0, %s42
      %s43 = sphi 0, %s40
      %s44 = sphi 0, %s43
      %s60 = sphi 0, %s44
      %s66 = sphi 0, %s68
      %s69 = sphi 0, %s66
      %s70 = sphi 0, %s69
      %s86 = sphi 0, %s70
      %s90 = sphi 0, %s90
      %s92 = sphi 0, %s90
      %s93 = sphi 0, %s92
      %s107 = sphi 0, %s93
      %s113 = sphi 0, %s115
      %s116 = sphi 0, %s113
      %s117 = sphi 0, %s116
      %s133 = sphi 0, %s117
      %s139 = sphi 0, %s141
      %s142 = sphi 0, %s139
      %s143 = sphi 0, %s142
      %s159 = sphi 0, %s143
      %s165 = sphi 0, %s167
      %s168 = sphi 0, %s165
      %s169 = sphi 0, %s168
      %s185 = sphi 0, %s169
      %s191 = sphi 0, %s193
      %s194 = sphi 0, %s191
      %s195 = sphi 0, %s194
      %s211 = sphi 0, %s195
      %s217 = sphi 0, %s219
      %s220 = sphi 0, %s217
      %s221 = sphi 0, %s220
      %s237 = sphi 0, %s221
      %s241 = sphi 0, %s241
      %s243 = sphi 0, %s241
      %s244 = sphi 0, %s243
      %s258 = sphi 0, %s244
      %s262 = sphi 0, %s262
      %s264 = sphi 0, %s262
      %s265 = sphi 0, %s264
      %s279 = sphi 0, %s265
      %s283 = sphi 0, %s283
      %s285 = sphi 0, %s283
      %s286 = sphi 0, %s285
      %s300 = sphi 0, %s286
      %s304 = sphi 0, %s304
      %s306 = sphi 0, %s304
      %s307 = sphi 0, %s306
      %s321 = sphi 0, %s307
      %s325 = sphi 0, %s325
      %s327 = sphi 0, %s325
      %s328 = sphi 0, %s327
      %s342 = sphi 0, %s328
      %s348 = sphi 0, %s350
      %s351 = sphi 0, %s348
      %s352 = sphi 0, %s351
      %s368 = sphi 0, %s352
      %s374 = sphi 0, %s376
      %s377 = sphi 0, %s374
      %s378 = sphi 0, %s377
      %s394 = sphi 0, %s378
      %s400 = sphi 0, %s402
      %s403 = sphi 0, %s400
      %s404 = sphi 0, %s403
      %s420 = sphi 0, %s404
      %s426 = sphi 0, %s428
      %s429 = sphi 0, %s426
      %s430 = sphi 0, %s429
      %s446 = sphi 0, %s430
    $region4: #{temos_forward.1} parent=1 // loop_header_branch
      %33 = sbr.rel (%p31) target = $region8
    $region5: #{temos_forward.1} parent=1 // loop_body
      %s35 = ssub.s32 %s30, 1
      %s36 = ssub.s32 %s30, 2
      %s37 = sadd.s32 %s30, 1
      %s38 = ssub.s32 %s30, %s37
      %p39 = scmp.eq.s32.totalorder %s38, 0
      %s41 = sadd.s32 %s40, 1
      %s42 = scalar_select %p39, %s40, %s41
      %p45 = pneg %p39
      %p46 = scmp.eq.s32.totalorder %s30, 1
      %p47 = por %p45, %p46
      %p48 = scmp.ne.s32.totalorder %s40, %s43
      %p49 = scmp.eq.s32.totalorder %s30, 0
      %p50 = por %p48, %p49
      %p51 = scmp.ne.s32.totalorder %s40, %s43
      %p52 = scmp.eq.s32.totalorder %s35, 1
      %p53 = por %p51, %p52
      %p54 = scmp.ne.s32.totalorder %s43, %s44
      %p55 = scmp.eq.s32.totalorder %s35, 0
      %p56 = por %p54, %p55
      %p57 = scmp.ne.s32.totalorder %s43, %s44
      %p58 = scmp.eq.s32.totalorder %s36, 1
      %p59 = por %p57, %p58
      %p61 = scmp.ne.s32.totalorder %s44, %s60
      %p62 = scmp.eq.s32.totalorder %s36, 0
      %p63 = por %p61, %p62
      %s64 = ssub.s32 %s30, %s37
      %p65 = scmp.eq.s32.totalorder %s64, 0
      %s67 = sadd.s32 %s66, 1
      %s68 = scalar_select %p65, %s66, %s67
      %p71 = pneg %p65
      %p72 = scmp.eq.s32.totalorder %s30, 1
      %p73 = por %p71, %p72
      %p74 = scmp.ne.s32.totalorder %s66, %s69
      %p75 = scmp.eq.s32.totalorder %s30, 0
      %p76 = por %p74, %p75
      %p77 = scmp.ne.s32.totalorder %s66, %s69
      %p78 = scmp.eq.s32.totalorder %s35, 1
      %p79 = por %p77, %p78
      %p80 = scmp.ne.s32.totalorder %s69, %s70
      %p81 = scmp.eq.s32.totalorder %s35, 0
      %p82 = por %p80, %p81
      %p83 = scmp.ne.s32.totalorder %s69, %s70
      %p84 = scmp.eq.s32.totalorder %s36, 1
      %p85 = por %p83, %p84
      %p87 = scmp.ne.s32.totalorder %s70, %s86
      %p88 = scmp.eq.s32.totalorder %s36, 0
      %p89 = por %p87, %p88
      %s91 = sadd.s32 %s90, 1
      %p94 = scmp.eq.s32.totalorder %s30, 1
      %p95 = scmp.ne.s32.totalorder %s90, %s92
      %p96 = scmp.eq.s32.totalorder %s30, 0
      %p97 = por %p95, %p96
      %p98 = scmp.ne.s32.totalorder %s90, %s92
      %p99 = scmp.eq.s32.totalorder %s35, 1
      %p100 = por %p98, %p99
      %p101 = scmp.ne.s32.totalorder %s92, %s93
      %p102 = scmp.eq.s32.totalorder %s35, 0
      %p103 = por %p101, %p102
      %p104 = scmp.ne.s32.totalorder %s92, %s93
      %p105 = scmp.eq.s32.totalorder %s36, 1
      %p106 = por %p104, %p105
      %p108 = scmp.ne.s32.totalorder %s93, %s107
      %p109 = scmp.eq.s32.totalorder %s36, 0
      %p110 = por %p108, %p109
      %s111 = ssub.s32 %s30, %s37
      %p112 = scmp.eq.s32.totalorder %s111, 0
      %s114 = sadd.s32 %s113, 1
      %s115 = scalar_select %p112, %s113, %s114
      %p118 = pneg %p112
      %p119 = scmp.eq.s32.totalorder %s30, 1
      %p120 = por %p118, %p119
      %p121 = scmp.ne.s32.totalorder %s113, %s116
      %p122 = scmp.eq.s32.totalorder %s30, 0
      %p123 = por %p121, %p122
      %p124 = scmp.ne.s32.totalorder %s113, %s116
      %p125 = scmp.eq.s32.totalorder %s35, 1
      %p126 = por %p124, %p125
      %p127 = scmp.ne.s32.totalorder %s116, %s117
      %p128 = scmp.eq.s32.totalorder %s35, 0
      %p129 = por %p127, %p128
      %p130 = scmp.ne.s32.totalorder %s116, %s117
      %p131 = scmp.eq.s32.totalorder %s36, 1
      %p132 = por %p130, %p131
      %p134 = scmp.ne.s32.totalorder %s117, %s133
      %p135 = scmp.eq.s32.totalorder %s36, 0
      %p136 = por %p134, %p135
      %s137 = ssub.s32 %s30, %s37
      %p138 = scmp.eq.s32.totalorder %s137, 0
      %s140 = sadd.s32 %s139, 1
      %s141 = scalar_select %p138, %s139, %s140
      %p144 = pneg %p138
      %p145 = scmp.eq.s32.totalorder %s30, 1
      %p146 = por %p144, %p145
      %p147 = scmp.ne.s32.totalorder %s139, %s142
      %p148 = scmp.eq.s32.totalorder %s30, 0
      %p149 = por %p147, %p148
      %p150 = scmp.ne.s32.totalorder %s139, %s142
      %p151 = scmp.eq.s32.totalorder %s35, 1
      %p152 = por %p150, %p151
      %p153 = scmp.ne.s32.totalorder %s142, %s143
      %p154 = scmp.eq.s32.totalorder %s35, 0
      %p155 = por %p153, %p154
      %p156 = scmp.ne.s32.totalorder %s142, %s143
      %p157 = scmp.eq.s32.totalorder %s36, 1
      %p158 = por %p156, %p157
      %p160 = scmp.ne.s32.totalorder %s143, %s159
      %p161 = scmp.eq.s32.totalorder %s36, 0
      %p162 = por %p160, %p161
      %s163 = ssub.s32 %s30, %s37
      %p164 = scmp.eq.s32.totalorder %s163, 0
      %s166 = sadd.s32 %s165, 1
      %s167 = scalar_select %p164, %s165, %s166
      %p170 = pneg %p164
      %p171 = scmp.eq.s32.totalorder %s30, 1
      %p172 = por %p170, %p171
      %p173 = scmp.ne.s32.totalorder %s165, %s168
      %p174 = scmp.eq.s32.totalorder %s30, 0
      %p175 = por %p173, %p174
      %p176 = scmp.ne.s32.totalorder %s165, %s168
      %p177 = scmp.eq.s32.totalorder %s35, 1
      %p178 = por %p176, %p177
      %p179 = scmp.ne.s32.totalorder %s168, %s169
      %p180 = scmp.eq.s32.totalorder %s35, 0
      %p181 = por %p179, %p180
      %p182 = scmp.ne.s32.totalorder %s168, %s169
      %p183 = scmp.eq.s32.totalorder %s36, 1
      %p184 = por %p182, %p183
      %p186 = scmp.ne.s32.totalorder %s169, %s185
      %p187 = scmp.eq.s32.totalorder %s36, 0
      %p188 = por %p186, %p187
      %s189 = ssub.s32 %s30, %s37
      %p190 = scmp.eq.s32.totalorder %s189, 0
      %s192 = sadd.s32 %s191, 1
      %s193 = scalar_select %p190, %s191, %s192
      %p196 = pneg %p190
      %p197 = scmp.eq.s32.totalorder %s30, 1
      %p198 = por %p196, %p197
      %p199 = scmp.ne.s32.totalorder %s191, %s194
      %p200 = scmp.eq.s32.totalorder %s30, 0
      %p201 = por %p199, %p200
      %p202 = scmp.ne.s32.totalorder %s191, %s194
      %p203 = scmp.eq.s32.totalorder %s35, 1
      %p204 = por %p202, %p203
      %p205 = scmp.ne.s32.totalorder %s194, %s195
      %p206 = scmp.eq.s32.totalorder %s35, 0
      %p207 = por %p205, %p206
      %p208 = scmp.ne.s32.totalorder %s194, %s195
      %p209 = scmp.eq.s32.totalorder %s36, 1
      %p210 = por %p208, %p209
      %p212 = scmp.ne.s32.totalorder %s195, %s211
      %p213 = scmp.eq.s32.totalorder %s36, 0
      %p214 = por %p212, %p213
      %s215 = ssub.s32 %s30, %s37
      %p216 = scmp.eq.s32.totalorder %s215, 0
      %s218 = sadd.s32 %s217, 1
      %s219 = scalar_select %p216, %s217, %s218
      %p222 = pneg %p216
      %p223 = scmp.eq.s32.totalorder %s30, 1
      %p224 = por %p222, %p223
      %p225 = scmp.ne.s32.totalorder %s217, %s220
      %p226 = scmp.eq.s32.totalorder %s30, 0
      %p227 = por %p225, %p226
      %p228 = scmp.ne.s32.totalorder %s217, %s220
      %p229 = scmp.eq.s32.totalorder %s35, 1
      %p230 = por %p228, %p229
      %p231 = scmp.ne.s32.totalorder %s220, %s221
      %p232 = scmp.eq.s32.totalorder %s35, 0
      %p233 = por %p231, %p232
      %p234 = scmp.ne.s32.totalorder %s220, %s221
      %p235 = scmp.eq.s32.totalorder %s36, 1
      %p236 = por %p234, %p235
      %p238 = scmp.ne.s32.totalorder %s221, %s237
      %p239 = scmp.eq.s32.totalorder %s36, 0
      %p240 = por %p238, %p239
      %s242 = sadd.s32 %s241, 1
      %p245 = scmp.eq.s32.totalorder %s30, 1
      %p246 = scmp.ne.s32.totalorder %s241, %s243
      %p247 = scmp.eq.s32.totalorder %s30, 0
      %p248 = por %p246, %p247
      %p249 = scmp.ne.s32.totalorder %s241, %s243
      %p250 = scmp.eq.s32.totalorder %s35, 1
      %p251 = por %p249, %p250
      %p252 = scmp.ne.s32.totalorder %s243, %s244
      %p253 = scmp.eq.s32.totalorder %s35, 0
      %p254 = por %p252, %p253
      %p255 = scmp.ne.s32.totalorder %s243, %s244
      %p256 = scmp.eq.s32.totalorder %s36, 1
      %p257 = por %p255, %p256
      %p259 = scmp.ne.s32.totalorder %s244, %s258
      %p260 = scmp.eq.s32.totalorder %s36, 0
      %p261 = por %p259, %p260
      %s263 = sadd.s32 %s262, 1
      %p266 = scmp.eq.s32.totalorder %s30, 1
      %p267 = scmp.ne.s32.totalorder %s262, %s264
      %p268 = scmp.eq.s32.totalorder %s30, 0
      %p269 = por %p267, %p268
      %p270 = scmp.ne.s32.totalorder %s262, %s264
      %p271 = scmp.eq.s32.totalorder %s35, 1
      %p272 = por %p270, %p271
      %p273 = scmp.ne.s32.totalorder %s264, %s265
      %p274 = scmp.eq.s32.totalorder %s35, 0
      %p275 = por %p273, %p274
      %p276 = scmp.ne.s32.totalorder %s264, %s265
      %p277 = scmp.eq.s32.totalorder %s36, 1
      %p278 = por %p276, %p277
      %p280 = scmp.ne.s32.totalorder %s265, %s279
      %p281 = scmp.eq.s32.totalorder %s36, 0
      %p282 = por %p280, %p281
      %s284 = sadd.s32 %s283, 1
      %p287 = scmp.eq.s32.totalorder %s30, 1
      %p288 = scmp.ne.s32.totalorder %s283, %s285
      %p289 = scmp.eq.s32.totalorder %s30, 0
      %p290 = por %p288, %p289
      %p291 = scmp.ne.s32.totalorder %s283, %s285
      %p292 = scmp.eq.s32.totalorder %s35, 1
      %p293 = por %p291, %p292
      %p294 = scmp.ne.s32.totalorder %s285, %s286
      %p295 = scmp.eq.s32.totalorder %s35, 0
      %p296 = por %p294, %p295
      %p297 = scmp.ne.s32.totalorder %s285, %s286
      %p298 = scmp.eq.s32.totalorder %s36, 1
      %p299 = por %p297, %p298
      %p301 = scmp.ne.s32.totalorder %s286, %s300
      %p302 = scmp.eq.s32.totalorder %s36, 0
      %p303 = por %p301, %p302
      %s305 = sadd.s32 %s304, 1
      %p308 = scmp.eq.s32.totalorder %s30, 1
      %p309 = scmp.ne.s32.totalorder %s304, %s306
      %p310 = scmp.eq.s32.totalorder %s30, 0
      %p311 = por %p309, %p310
      %p312 = scmp.ne.s32.totalorder %s304, %s306
      %p313 = scmp.eq.s32.totalorder %s35, 1
      %p314 = por %p312, %p313
      %p315 = scmp.ne.s32.totalorder %s306, %s307
      %p316 = scmp.eq.s32.totalorder %s35, 0
      %p317 = por %p315, %p316
      %p318 = scmp.ne.s32.totalorder %s306, %s307
      %p319 = scmp.eq.s32.totalorder %s36, 1
      %p320 = por %p318, %p319
      %p322 = scmp.ne.s32.totalorder %s307, %s321
      %p323 = scmp.eq.s32.totalorder %s36, 0
      %p324 = por %p322, %p323
      %s326 = sadd.s32 %s325, 1
      %p329 = scmp.eq.s32.totalorder %s30, 1
      %p330 = scmp.ne.s32.totalorder %s325, %s327
      %p331 = scmp.eq.s32.totalorder %s30, 0
      %p332 = por %p330, %p331
      %p333 = scmp.ne.s32.totalorder %s325, %s327
      %p334 = scmp.eq.s32.totalorder %s35, 1
      %p335 = por %p333, %p334
      %p336 = scmp.ne.s32.totalorder %s327, %s328
      %p337 = scmp.eq.s32.totalorder %s35, 0
      %p338 = por %p336, %p337
      %p339 = scmp.ne.s32.totalorder %s327, %s328
      %p340 = scmp.eq.s32.totalorder %s36, 1
      %p341 = por %p339, %p340
      %p343 = scmp.ne.s32.totalorder %s328, %s342
      %p344 = scmp.eq.s32.totalorder %s36, 0
      %p345 = por %p343, %p344
      %s346 = ssub.s32 %s30, %s37
      %p347 = scmp.eq.s32.totalorder %s346, 0
      %s349 = sadd.s32 %s348, 1
      %s350 = scalar_select %p347, %s348, %s349
      %p353 = pneg %p347
      %p354 = scmp.eq.s32.totalorder %s30, 1
      %p355 = por %p353, %p354
      %p356 = scmp.ne.s32.totalorder %s348, %s351
      %p357 = scmp.eq.s32.totalorder %s30, 0
      %p358 = por %p356, %p357
      %p359 = scmp.ne.s32.totalorder %s348, %s351
      %p360 = scmp.eq.s32.totalorder %s35, 1
      %p361 = por %p359, %p360
      %p362 = scmp.ne.s32.totalorder %s351, %s352
      %p363 = scmp.eq.s32.totalorder %s35, 0
      %p364 = por %p362, %p363
      %p365 = scmp.ne.s32.totalorder %s351, %s352
      %p366 = scmp.eq.s32.totalorder %s36, 1
      %p367 = por %p365, %p366
      %p369 = scmp.ne.s32.totalorder %s352, %s368
      %p370 = scmp.eq.s32.totalorder %s36, 0
      %p371 = por %p369, %p370
      %s372 = ssub.s32 %s30, %s37
      %p373 = scmp.eq.s32.totalorder %s372, 0
      %s375 = sadd.s32 %s374, 1
      %s376 = scalar_select %p373, %s374, %s375
      %p379 = pneg %p373
      %p380 = scmp.eq.s32.totalorder %s30, 1
      %p381 = por %p379, %p380
      %p382 = scmp.ne.s32.totalorder %s374, %s377
      %p383 = scmp.eq.s32.totalorder %s30, 0
      %p384 = por %p382, %p383
      %p385 = scmp.ne.s32.totalorder %s374, %s377
      %p386 = scmp.eq.s32.totalorder %s35, 1
      %p387 = por %p385, %p386
      %p388 = scmp.ne.s32.totalorder %s377, %s378
      %p389 = scmp.eq.s32.totalorder %s35, 0
      %p390 = por %p388, %p389
      %p391 = scmp.ne.s32.totalorder %s377, %s378
      %p392 = scmp.eq.s32.totalorder %s36, 1
      %p393 = por %p391, %p392
      %p395 = scmp.ne.s32.totalorder %s378, %s394
      %p396 = scmp.eq.s32.totalorder %s36, 0
      %p397 = por %p395, %p396
      %s398 = ssub.s32 %s30, %s37
      %p399 = scmp.eq.s32.totalorder %s398, 0
      %s401 = sadd.s32 %s400, 1
      %s402 = scalar_select %p399, %s400, %s401
      %p405 = pneg %p399
      %p406 = scmp.eq.s32.totalorder %s30, 1
      %p407 = por %p405, %p406
      %p408 = scmp.ne.s32.totalorder %s400, %s403
      %p409 = scmp.eq.s32.totalorder %s30, 0
      %p410 = por %p408, %p409
      %p411 = scmp.ne.s32.totalorder %s400, %s403
      %p412 = scmp.eq.s32.totalorder %s35, 1
      %p413 = por %p411, %p412
      %p414 = scmp.ne.s32.totalorder %s403, %s404
      %p415 = scmp.eq.s32.totalorder %s35, 0
      %p416 = por %p414, %p415
      %p417 = scmp.ne.s32.totalorder %s403, %s404
      %p418 = scmp.eq.s32.totalorder %s36, 1
      %p419 = por %p417, %p418
      %p421 = scmp.ne.s32.totalorder %s404, %s420
      %p422 = scmp.eq.s32.totalorder %s36, 0
      %p423 = por %p421, %p422
      %s424 = ssub.s32 %s30, %s37
      %p425 = scmp.eq.s32.totalorder %s424, 0
      %s427 = sadd.s32 %s426, 1
      %s428 = scalar_select %p425, %s426, %s427
      %p431 = pneg %p425
      %p432 = scmp.eq.s32.totalorder %s30, 1
      %p433 = por %p431, %p432
      %p434 = scmp.ne.s32.totalorder %s426, %s429
      %p435 = scmp.eq.s32.totalorder %s30, 0
      %p436 = por %p434, %p435
      %p437 = scmp.ne.s32.totalorder %s426, %s429
      %p438 = scmp.eq.s32.totalorder %s35, 1
      %p439 = por %p437, %p438
      %p440 = scmp.ne.s32.totalorder %s429, %s430
      %p441 = scmp.eq.s32.totalorder %s35, 0
      %p442 = por %p440, %p441
      %p443 = scmp.ne.s32.totalorder %s429, %s430
      %p444 = scmp.eq.s32.totalorder %s36, 1
      %p445 = por %p443, %p444
      %p447 = scmp.ne.s32.totalorder %s430, %s446
      %p448 = scmp.eq.s32.totalorder %s36, 0
      %p449 = por %p447, %p448
      %p450 = scmp.le.s32.totalorder 1, %s30
      %p451 = scmp.lt.s32.totalorder %s30, 3
      %p452 = pnand %p450, %p451
      %p453 = pneg %p452
      // Predicated region
      $region9: #{temos_forward.1} parent=5 // pred_check
        _
      $region10: #{temos_forward.1} parent=5 // pred_check_branch
        %455 = sbr.rel (%p452) target = $region12
      $region11: #{temos_forward.1} parent=5 // pred_region
        %s456 = ssub.s32 %s30, 1
        // Predicated region
        $region13: #{temos_forward.1} parent=11 // pred_check
          %p457 = pneg %p103
        $region14: #{temos_forward.1} parent=11 // pred_check_branch
          %459 = sbr.rel (%p457) target = $region16
        $region15: #{temos_forward.1} parent=11 // pred_region
          _
        $region16: #{temos_forward.1} parent=11 // pred_fallthru
          _
        // Predicated region
        $region17: #{temos_forward.1} parent=11 // pred_check
          %p460 = pneg %p254
        $region18: #{temos_forward.1} parent=11 // pred_check_branch
          %462 = sbr.rel (%p460) target = $region20
        $region19: #{temos_forward.1} parent=11 // pred_region
          _
        $region20: #{temos_forward.1} parent=11 // pred_fallthru
          _
        // Predicated region
        $region21: #{temos_forward.1} parent=11 // pred_check
          %p463 = pneg %p275
        $region22: #{temos_forward.1} parent=11 // pred_check_branch
          %465 = sbr.rel (%p463) target = $region24
        $region23: #{temos_forward.1} parent=11 // pred_region
          %467 = vsyncadd [#allocation5], 0
          %s468 = sshll.u32 %s9, 4
          %s469 = int_to_ptr.hbm [resolvable:$true] %s468
          %s470 = sshll.u32 [#allocation6], 4
          %s471 = int_to_ptr.vmem [resolvable:$true] %s470
          %476 = dma.hbm_to_vmem [thread:$0]  %s469, 2048, %s471, [#allocation5], 128, 128, 8
        $region24: #{temos_forward.1} parent=11 // pred_fallthru
          _
        // Predicated region
        $region25: #{temos_forward.1} parent=11 // pred_check
          %p477 = pneg %p296
        $region26: #{temos_forward.1} parent=11 // pred_check_branch
          %479 = sbr.rel (%p477) target = $region28
        $region27: #{temos_forward.1} parent=11 // pred_region
          _
        $region28: #{temos_forward.1} parent=11 // pred_fallthru
          _
        // Predicated region
        $region29: #{temos_forward.1} parent=11 // pred_check
          %p480 = pneg %p317
        $region30: #{temos_forward.1} parent=11 // pred_check_branch
          %482 = sbr.rel (%p480) target = $region32
        $region31: #{temos_forward.1} parent=11 // pred_region
          %484 = vsyncadd [#allocation8], 0
          %s485 = sshll.u32 %s11, 4
          %s486 = int_to_ptr.hbm [resolvable:$true] %s485
          %s487 = sshll.u32 [#allocation7], 4
          %s488 = int_to_ptr.vmem [resolvable:$true] %s487
          %493 = dma.hbm_to_vmem [thread:$0]  %s486, 2048, %s488, [#allocation8], 128, 128, 8
        $region32: #{temos_forward.1} parent=11 // pred_fallthru
          _
        // Predicated region
        $region33: #{temos_forward.1} parent=11 // pred_check
          %p494 = pneg %p338
        $region34: #{temos_forward.1} parent=11 // pred_check_branch
          %496 = sbr.rel (%p494) target = $region36
        $region35: #{temos_forward.1} parent=11 // pred_region
          _
        $region36: #{temos_forward.1} parent=11 // pred_fallthru
          _
      $region12: #{temos_forward.1} parent=5 // pred_fallthru
        _
      %p497 = scmp.lt.s32.totalorder %s30, 2
      // Predicated region
      $region37: #{temos_forward.1} parent=5 // pred_check
        %p498 = pneg %p497
      $region38: #{temos_forward.1} parent=5 // pred_check_branch
        %500 = sbr.rel (%p498) target = $region40
      $region39: #{temos_forward.1} parent=5 // pred_region
        // Predicated region
        $region41: #{temos_forward.1} parent=39 // pred_check
          %p501 = pneg %p50
        $region42: #{temos_forward.1} parent=39 // pred_check_branch
          %503 = sbr.rel (%p501) target = $region44
        $region43: #{temos_forward.1} parent=39 // pred_region
          %p504 = scmp.lt.s32.totalorder %s30, 1
          %s505 = scalar_select %p504, %s30, 1
          %s506 = smul.addr %s505, 2
          %s507 = smul.addr %s506, 8
          %s508 = scalar_lea.vmem %s0, %s507
        $region44: #{temos_forward.1} parent=39 // pred_fallthru
          _
        // Predicated region
        $region45: #{temos_forward.1} parent=39 // pred_check
          %p509 = pneg %p76
        $region46: #{temos_forward.1} parent=39 // pred_check_branch
          %511 = sbr.rel (%p509) target = $region48
        $region47: #{temos_forward.1} parent=39 // pred_region
          %p512 = scmp.lt.s32.totalorder %s30, 1
          %s513 = scalar_select %p512, %s30, 1
          %s514 = smul.addr %s513, 2
          %s515 = scalar_lea.vmem %s1, %s514
        $region48: #{temos_forward.1} parent=39 // pred_fallthru
          _
        // Predicated region
        $region49: #{temos_forward.1} parent=39 // pred_check
          %p516 = pneg %p123
        $region50: #{temos_forward.1} parent=39 // pred_check_branch
          %518 = sbr.rel (%p516) target = $region52
        $region51: #{temos_forward.1} parent=39 // pred_region
          %p519 = scmp.lt.s32.totalorder %s30, 1
          %s520 = scalar_select %p519, %s30, 1
          %s521 = smul.addr %s520, 2
          %s522 = scalar_lea.vmem %s3, %s521
        $region52: #{temos_forward.1} parent=39 // pred_fallthru
          _
        // Predicated region
        $region53: #{temos_forward.1} parent=39 // pred_check
          %p523 = pneg %p149
        $region54: #{temos_forward.1} parent=39 // pred_check_branch
          %525 = sbr.rel (%p523) target = $region56
        $region55: #{temos_forward.1} parent=39 // pred_region
          %s526 = sand.u32 %s139, 1
          %s527 = scalar_lea.sflag [#allocation3], %s526
          %s528 = sand.u32 %s139, 1
          %s529 = smul.addr %s528, 128
          %s530 = scalar_lea.vmem [#allocation2], %s529
          %532 = vsyncadd %s527, 0
          %s533 = smul.addr %s30, 16
          %s534 = smul.addr %s533, 8
          %s535 = scalar_lea.hbm %s4, %s534
          %s536 = sshll.u32 %s535, 4
          %s537 = int_to_ptr.hbm [resolvable:$true] %s536
          %s538 = sshll.u32 %s530, 4
          %s539 = int_to_ptr.vmem [resolvable:$true] %s538
          %544 = dma.hbm_to_vmem [thread:$0]  %s537, 2048, %s539, %s527, 128, 128, 8
        $region56: #{temos_forward.1} parent=39 // pred_fallthru
          _
        // Predicated region
        $region57: #{temos_forward.1} parent=39 // pred_check
          %p545 = pneg %p175
        $region58: #{temos_forward.1} parent=39 // pred_check_branch
          %547 = sbr.rel (%p545) target = $region60
        $region59: #{temos_forward.1} parent=39 // pred_region
          %p548 = scmp.lt.s32.totalorder %s30, 1
          %s549 = scalar_select %p548, %s30, 1
          %s550 = scalar_lea.vmem %s5, %s549
        $region60: #{temos_forward.1} parent=39 // pred_fallthru
          _
        // Predicated region
        $region61: #{temos_forward.1} parent=39 // pred_check
          %p551 = pneg %p201
        $region62: #{temos_forward.1} parent=39 // pred_check_branch
          %553 = sbr.rel (%p551) target = $region64
        $region63: #{temos_forward.1} parent=39 // pred_region
          %s554 = sand.u32 %s30, 1
          %s555 = scalar_lea.sflag [#allocation5], %s554
          %s556 = sand.u32 %s191, 1
          %s557 = smul.addr %s556, 256
          %s558 = scalar_lea.vmem [#allocation4], %s557
          %560 = vsyncadd %s555, 0
          %s561 = smul.addr %s30, 32
          %s562 = smul.addr %s561, 8
          %s563 = scalar_lea.hbm %s6, %s562
          %s564 = sshll.u32 %s563, 4
          %s565 = int_to_ptr.hbm [resolvable:$true] %s564
          %s566 = sshll.u32 %s558, 4
          %s567 = int_to_ptr.vmem [resolvable:$true] %s566
          %572 = dma.hbm_to_vmem [thread:$0]  %s565, 4096, %s567, %s555, 256, 256, 16
        $region64: #{temos_forward.1} parent=39 // pred_fallthru
          _
        // Predicated region
        $region65: #{temos_forward.1} parent=39 // pred_check
          %p573 = pneg %p227
        $region66: #{temos_forward.1} parent=39 // pred_check_branch
          %575 = sbr.rel (%p573) target = $region68
        $region67: #{temos_forward.1} parent=39 // pred_region
          %p576 = scmp.lt.s32.totalorder %s30, 1
          %s577 = scalar_select %p576, %s30, 1
          %s578 = smul.addr %s577, 2
          %s579 = scalar_lea.vmem %s7, %s578
        $region68: #{temos_forward.1} parent=39 // pred_fallthru
          _
      $region40: #{temos_forward.1} parent=5 // pred_fallthru
        _
      %p580 = scmp.le.s32.totalorder 1, %s30
      %p581 = scmp.lt.s32.totalorder %s30, 3
      %p582 = pnand %p580, %p581
      %p583 = pneg %p582
      // Predicated region
      $region69: #{temos_forward.1} parent=5 // pred_check
        _
      $region70: #{temos_forward.1} parent=5 // pred_check_branch
        %585 = sbr.rel (%p582) target = $region72
      $region71: #{temos_forward.1} parent=5 // pred_region
        %s586 = ssub.s32 %s30, 1
        %s587 = sand.u32 %s142, 1
        %s588 = scalar_lea.sflag [#allocation3], %s587
        %s589 = sand.u32 %s142, 1
        %s590 = smul.addr %s589, 128
        %s591 = scalar_lea.vmem [#allocation2], %s590
        // Predicated region
        $region73: #{temos_forward.1} parent=71 // pred_check
          %p592 = pneg %p155
        $region74: #{temos_forward.1} parent=71 // pred_check_branch
          %594 = sbr.rel (%p592) target = $region76
        $region75: #{temos_forward.1} parent=71 // pred_region
          %596 = dma.done %s588, 2048
        $region76: #{temos_forward.1} parent=71 // pred_fallthru
          _
        %s597 = sand.u32 %s35, 1
        %s598 = scalar_lea.sflag [#allocation5], %s597
        %s599 = sand.u32 %s194, 1
        %s600 = smul.addr %s599, 256
        %s601 = scalar_lea.vmem [#allocation4], %s600
        // Predicated region
        $region77: #{temos_forward.1} parent=71 // pred_check
          %p602 = pneg %p207
        $region78: #{temos_forward.1} parent=71 // pred_check_branch
          %604 = sbr.rel (%p602) target = $region80
        $region79: #{temos_forward.1} parent=71 // pred_region
          %606 = dma.done %s598, 4096
        $region80: #{temos_forward.1} parent=71 // pred_fallthru
          _
        // Predicated region
        $region81: #{temos_forward.1} parent=71 // pred_check
          %p607 = pneg %p275
        $region82: #{temos_forward.1} parent=71 // pred_check_branch
          %609 = sbr.rel (%p607) target = $region84
        $region83: #{temos_forward.1} parent=71 // pred_region
          %611 = dma.done [#allocation5], 2048
        $region84: #{temos_forward.1} parent=71 // pred_fallthru
          _
        // Predicated region
        $region85: #{temos_forward.1} parent=71 // pred_check
          %p612 = pneg %p317
        $region86: #{temos_forward.1} parent=71 // pred_check_branch
          %614 = sbr.rel (%p612) target = $region88
        $region87: #{temos_forward.1} parent=71 // pred_region
          %616 = dma.done [#allocation8], 2048
        $region88: #{temos_forward.1} parent=71 // pred_fallthru
          _
        %p617 = scmp.lt.s32.totalorder %s35, 1
        %s618 = scalar_select %p617, %s35, 1
        %s619 = smul.addr %s618, 2
        %s620 = smul.addr %s619, 8
        %s621 = scalar_lea.vmem %s0, %s620
        %p622 = pneg %p56
        %p623 = pneg %p53
        %p624 = scmp.lt.s32.totalorder %s35, 1
        %s625 = scalar_select %p624, %s35, 1
        %s626 = smul.addr %s625, 2
        %s627 = scalar_lea.vmem %s1, %s626
        %p628 = pneg %p82
        %p629 = pneg %p79
        %p630 = pneg %p103
        %p631 = pneg %p100
        %p632 = scmp.lt.s32.totalorder %s35, 1
        %s633 = scalar_select %p632, %s35, 1
        %s634 = smul.addr %s633, 2
        %s635 = scalar_lea.vmem %s3, %s634
        %p636 = pneg %p129
        %p637 = pneg %p126
        %s638 = sand.u32 %s142, 1
        %s639 = scalar_lea.sflag [#allocation3], %s638
        %s640 = sand.u32 %s142, 1
        %s641 = smul.addr %s640, 128
        %s642 = scalar_lea.vmem [#allocation2], %s641
        %p643 = pneg %p155
        %p644 = pneg %p152
        %p645 = scmp.lt.s32.totalorder %s35, 1
        %s646 = scalar_select %p645, %s35, 1
        %s647 = scalar_lea.vmem %s5, %s646
        %p648 = pneg %p181
        %p649 = pneg %p178
        %s650 = sand.u32 %s35, 1
        %s651 = scalar_lea.sflag [#allocation5], %s650
        %s652 = sand.u32 %s194, 1
        %s653 = smul.addr %s652, 256
        %s654 = scalar_lea.vmem [#allocation4], %s653
        %p655 = pneg %p207
        %p656 = pneg %p204
        %p657 = scmp.lt.s32.totalorder %s35, 1
        %s658 = scalar_select %p657, %s35, 1
        %s659 = smul.addr %s658, 2
        %s660 = scalar_lea.vmem %s7, %s659
        %p661 = pneg %p233
        %p662 = pneg %p230
        %p663 = pneg %p254
        %p664 = pneg %p251
        %p665 = pneg %p275
        %p666 = pneg %p272
        %p667 = pneg %p296
        %p668 = pneg %p293
        %p669 = pneg %p317
        %p670 = pneg %p314
        %p671 = pneg %p338
        %p672 = pneg %p335
        %p673 = pneg %p364
        %p674 = pneg %p361
        %p675 = scmp.lt.s32.totalorder %s35, 1
        %s676 = scalar_select %p675, %s35, 1
        %s677 = smul.addr %s676, 2
        %s678 = smul.addr %s677, 8
        %s679 = scalar_lea.vmem %s13, %s678
        %p680 = pneg %p390
        %p681 = pneg %p387
        %p682 = scmp.lt.s32.totalorder %s35, 1
        %s683 = scalar_select %p682, %s35, 1
        %s684 = smul.addr %s683, 2
        %s685 = scalar_lea.vmem %s14, %s684
        %p686 = pneg %p416
        %p687 = pneg %p413
        %p688 = scmp.lt.s32.totalorder %s35, 1
        %s689 = scalar_select %p688, %s35, 1
        %s690 = smul.addr %s689, 2
        %s691 = scalar_lea.vmem %s15, %s690
        %p692 = pneg %p442
        %p693 = pneg %p439
        %p694 = scmp.lt.s32.totalorder %s35, 1
        %s695 = scalar_select %p694, %s35, 1
        %s696 = smul.addr %s695, 2
        %s697 = scalar_lea.vmem %s16, %s696
        %p698 = scmp.lt.s32.totalorder %s35, 1
        %s699 = scalar_select %p698, %s35, 1
        %s700 = smul.addr %s699, 2
        %s701 = smul.addr %s700, 8
        %s702 = scalar_lea.vmem %s0, %s701
        %p703 = scmp.lt.s32.totalorder %s35, 1
        %s704 = scalar_select %p703, %s35, 1
        %s705 = smul.addr %s704, 2
        %s706 = scalar_lea.vmem %s1, %s705
        %p707 = scmp.lt.s32.totalorder %s35, 1
        %s708 = scalar_select %p707, %s35, 1
        %s709 = smul.addr %s708, 2
        %s710 = scalar_lea.vmem %s3, %s709
        %p711 = scmp.lt.s32.totalorder %s35, 1
        %s712 = scalar_select %p711, %s35, 1
        %s713 = scalar_lea.vmem %s5, %s712
        %p714 = scmp.lt.s32.totalorder %s35, 1
        %s715 = scalar_select %p714, %s35, 1
        %s716 = smul.addr %s715, 2
        %s717 = scalar_lea.vmem %s7, %s716
        %p718 = scmp.lt.s32.totalorder %s35, 1
        %s719 = scalar_select %p718, %s35, 1
        %s720 = smul.addr %s719, 2
        %s721 = smul.addr %s720, 8
        %s722 = scalar_lea.vmem %s13, %s721
        %p723 = scmp.lt.s32.totalorder %s35, 1
        %s724 = scalar_select %p723, %s35, 1
        %s725 = smul.addr %s724, 2
        %s726 = scalar_lea.vmem %s14, %s725
        %p727 = scmp.lt.s32.totalorder %s35, 1
        %s728 = scalar_select %p727, %s35, 1
        %s729 = smul.addr %s728, 2
        %s730 = scalar_lea.vmem %s15, %s729
        %p731 = scmp.lt.s32.totalorder %s35, 1
        %s732 = scalar_select %p731, %s35, 1
        %s733 = smul.addr %s732, 2
        %s734 = scalar_lea.vmem %s16, %s733
        %v735 = vld [vmem:[%s702] sm:$0xff]
        %v736 = vld [vmem:[%s702 + $0x8] sm:$0xff]
        %v737 = vld [vmem:[%s591] sm:$0xff]
        %v738 = vld [vmem:[%s591 + $0x8] sm:$0xff]
        %v739 = vld [vmem:[%s591 + $0x10] sm:$0xff]
        %v740 = vld [vmem:[%s591 + $0x18] sm:$0xff]
        %v741 = vld [vmem:[%s591 + $0x20] sm:$0xff]
        %v742 = vld [vmem:[%s591 + $0x28] sm:$0xff]
        %v743 = vld [vmem:[%s591 + $0x30] sm:$0xff]
        %v744 = vld [vmem:[%s591 + $0x38] sm:$0xff]
        %v745 = vld [vmem:[%s591 + $0x40] sm:$0xff]
        %v746 = vld [vmem:[%s591 + $0x48] sm:$0xff]
        %v747 = vld [vmem:[%s591 + $0x50] sm:$0xff]
        %v748 = vld [vmem:[%s591 + $0x58] sm:$0xff]
        %v749 = vld [vmem:[%s591 + $0x60] sm:$0xff]
        %v750 = vld [vmem:[%s591 + $0x68] sm:$0xff]
        %v751 = vld [vmem:[%s591 + $0x70] sm:$0xff]
        %v752 = vld [vmem:[%s591 + $0x78] sm:$0xff]
        %v753 = vld [vmem:[%s713] sm:$0x1]
        %v755 = vperm.slane %v753, 0
        %757 = vmatpush.msra.mxu0 %v752
        %758 = vmatpush.msra.mxu0 %v751
        %759 = vmatpush.msra.mxu0 %v750
        %760 = vmatpush.msra.mxu0 %v749
        %761 = vmatpush.msra.mxu0 %v748
        %762 = vmatpush.msra.mxu0 %v747
        %763 = vmatpush.msra.mxu0 %v746
        %764 = vmatpush.msra.mxu0 %v745
        %765 = vmatpush.msra.mxu0 %v744
        %766 = vmatpush.msra.mxu0 %v743
        %767 = vmatpush.msra.mxu0 %v742
        %768 = vmatpush.msra.mxu0 %v741
        %769 = vmatpush.msra.mxu0 %v740
        %770 = vmatpush.msra.mxu0 %v739
        %771 = vmatpush.msra.mxu0 %v738
        %772 = vmatpush.msra.mxu0 %v737
        %773 = vmatmul.f32.gmra.mxu0 %v735
        %v774 = vpop.f32.mrf.mxu0
        %v775 = vadd.f32 %v755, %v774
        %776 = vmatmul.f32.gmra.mxu0 %v736
        %v777 = vpop.f32.mrf.mxu0
        %v778 = vadd.f32 %v755, %v777
        %779 = vdwg.mxu0
        %v780 = vmax.f32 %v775, 0.0
        %v781 = vmax.f32 %v778, 0.0
        %v782 = vld [vmem:[%s706] sm:$0x3]
        %v783 = vlaneseq
        %v784 = vand.u32 %v783, 127
        %785 = vset.pattern.permute.xlu0 0
        %786 = vperm.xlu0 %785, %v782
        %v787 = vpop.permute.xlu0 %786
        %vm788 = vcmp.lt.s32.totalorder %v784, %v787
        %v789 = vsel %vm788, 1, 0
        %v790 = vcvt.s32.f32 %v789
        %v791 = vperm.slane %v790, 0
        %v792 = vlaneseq
        %v793 = vshrl.u32 %v792, 7
        %795 = vset.pattern.permute.xlu0 %v793
        %796 = vperm.xlu0 %795, %v791
        %v797 = vpop.permute.xlu0 %796
        %v798 = vperm.slane %v790, 1
        %v799 = vlaneseq
        %v800 = vshrl.u32 %v799, 7
        %802 = vset.pattern.permute.xlu0 %v800
        %803 = vperm.xlu0 %802, %v798
        %v804 = vpop.permute.xlu0 %803
        %v805 = vcvt.s32.f32 %v782
        %v806 = vmax.f32 %v805, 1.0
        %v807 = vrcp.pop %v806
        %v808 = vmul.f32 %v780, %v797
        %v809 = vmul.f32 %v781, %v804
        %v810 = vrot.slane %v808, 4
        %v811 = vadd.f32 %v808, %v810
        %v812 = vrot.slane %v811, 2
        %v813 = vadd.f32 %v811, %v812
        %v814 = vrot.slane %v813, 1
        %v815 = vadd.f32 %v813, %v814
        %v816 = vrot.slane %v809, 4
        %v817 = vadd.f32 %v809, %v816
        %v818 = vrot.slane %v817, 2
        %v819 = vadd.f32 %v817, %v818
        %v820 = vrot.slane %v819, 1
        %v821 = vadd.f32 %v819, %v820
        %823 = vset.pattern.permute.xlu0 0
        %824 = vperm.xlu0 %823, %v807
        %v825 = vpop.permute.xlu0 %824
        %v826 = vrot.slane %v825, 1
        %v829 = vmul.f32 %v815, %v825
        %v830 = vmul.f32 %v821, %v826
        %v831 = vld [vmem:[%s601] sm:$0xff]
        %v832 = vld [vmem:[%s601 + $0x8] sm:$0xff]
        %v833 = vld [vmem:[%s601 + $0x10] sm:$0xff]
        %v834 = vld [vmem:[%s601 + $0x18] sm:$0xff]
        %v835 = vld [vmem:[%s601 + $0x20] sm:$0xff]
        %v836 = vld [vmem:[%s601 + $0x28] sm:$0xff]
        %v837 = vld [vmem:[%s601 + $0x30] sm:$0xff]
        %v838 = vld [vmem:[%s601 + $0x38] sm:$0xff]
        %v839 = vld [vmem:[%s601 + $0x40] sm:$0xff]
        %v840 = vld [vmem:[%s601 + $0x48] sm:$0xff]
        %v841 = vld [vmem:[%s601 + $0x50] sm:$0xff]
        %v842 = vld [vmem:[%s601 + $0x58] sm:$0xff]
        %v843 = vld [vmem:[%s601 + $0x60] sm:$0xff]
        %v844 = vld [vmem:[%s601 + $0x68] sm:$0xff]
        %v845 = vld [vmem:[%s601 + $0x70] sm:$0xff]
        %v846 = vld [vmem:[%s601 + $0x78] sm:$0xff]
        %v847 = vld [vmem:[%s601 + $0x80] sm:$0xff]
        %v848 = vld [vmem:[%s601 + $0x88] sm:$0xff]
        %v849 = vld [vmem:[%s601 + $0x90] sm:$0xff]
        %v850 = vld [vmem:[%s601 + $0x98] sm:$0xff]
        %v851 = vld [vmem:[%s601 + $0xa0] sm:$0xff]
        %v852 = vld [vmem:[%s601 + $0xa8] sm:$0xff]
        %v853 = vld [vmem:[%s601 + $0xb0] sm:$0xff]
        %v854 = vld [vmem:[%s601 + $0xb8] sm:$0xff]
        %v855 = vld [vmem:[%s601 + $0xc0] sm:$0xff]
        %v856 = vld [vmem:[%s601 + $0xc8] sm:$0xff]
        %v857 = vld [vmem:[%s601 + $0xd0] sm:$0xff]
        %v858 = vld [vmem:[%s601 + $0xd8] sm:$0xff]
        %v859 = vld [vmem:[%s601 + $0xe0] sm:$0xff]
        %v860 = vld [vmem:[%s601 + $0xe8] sm:$0xff]
        %v861 = vld [vmem:[%s601 + $0xf0] sm:$0xff]
        %v862 = vld [vmem:[%s601 + $0xf8] sm:$0xff]
        %v863 = vld [vmem:[%s717] sm:$0x3]
        %v865 = vperm.slane %v863, 0
        %v866 = vperm.slane %v863, 1
        %v871 = vrot.slane %v830, 7
        %vm872 = vcmask 1041409
        %v873 = vsel %vm872, %v871, %v829
        %875 = vmatpush.msra.mxu0 %v861
        %876 = vmatpush.msra.mxu0 %v859
        %877 = vmatpush.msra.mxu0 %v857
        %878 = vmatpush.msra.mxu0 %v855
        %879 = vmatpush.msra.mxu0 %v853
        %880 = vmatpush.msra.mxu0 %v851
        %881 = vmatpush.msra.mxu0 %v849
        %882 = vmatpush.msra.mxu0 %v847
        %883 = vmatpush.msra.mxu0 %v845
        %884 = vmatpush.msra.mxu0 %v843
        %885 = vmatpush.msra.mxu0 %v841
        %886 = vmatpush.msra.mxu0 %v839
        %887 = vmatpush.msra.mxu0 %v837
        %888 = vmatpush.msra.mxu0 %v835
        %889 = vmatpush.msra.mxu0 %v833
        %890 = vmatpush.msra.mxu0 %v831
        %891 = vmatmul.f32.gmra.mxu0 %v873
        %v892 = vpop.f32.mrf.mxu0
        %v893 = vadd.f32 %v865, %v892
        %894 = vdwg.mxu0
        %895 = vmatpush.msra.mxu0 %v862
        %896 = vmatpush.msra.mxu0 %v860
        %897 = vmatpush.msra.mxu0 %v858
        %898 = vmatpush.msra.mxu0 %v856
        %899 = vmatpush.msra.mxu0 %v854
        %900 = vmatpush.msra.mxu0 %v852
        %901 = vmatpush.msra.mxu0 %v850
        %902 = vmatpush.msra.mxu0 %v848
        %903 = vmatpush.msra.mxu0 %v846
        %904 = vmatpush.msra.mxu0 %v844
        %905 = vmatpush.msra.mxu0 %v842
        %906 = vmatpush.msra.mxu0 %v840
        %907 = vmatpush.msra.mxu0 %v838
        %908 = vmatpush.msra.mxu0 %v836
        %909 = vmatpush.msra.mxu0 %v834
        %910 = vmatpush.msra.mxu0 %v832
        %911 = vmatmul.f32.gmra.mxu0 %v873
        %v912 = vpop.f32.mrf.mxu0
        %v913 = vadd.f32 %v866, %v912
        %914 = vdwg.mxu0
        %v915 = vmul.f32 %v913, 0.5
        %v916 = vmul.f32 %v915, 1.442695
        %v917 = vpow.pop %v916
        %v918 = vld [vmem:[%s710] sm:$0x3]
        %v919 = vmul.f32 %v917, %v918
        %v920 = vadd.f32 %v893, %v919
        %921 = vst [vmem:[%s726] sm:$0x3] %v893
        %922 = vst [vmem:[%s730] sm:$0x3] %v917
        %923 = vst [vmem:[%s734] sm:$0x3] %v920
        %v925 = vrot.slane %v920, 1
        %v926 = vld [vmem:[%s8] sm:$0xff]
        %v927 = vperm.slane %v920, 0
        %v928 = vperm.slane %v925, 0
        %v931 = vadd.f32 %v927, %v926
        %v932 = vadd.f32 %v928, %v926
        %v933 = vld [vmem:[#allocation6] sm:$0xff]
        %v934 = vld [vmem:[#allocation6 + $0x8] sm:$0xff]
        %v935 = vld [vmem:[#allocation6 + $0x10] sm:$0xff]
        %v936 = vld [vmem:[#allocation6 + $0x18] sm:$0xff]
        %v937 = vld [vmem:[#allocation6 + $0x20] sm:$0xff]
        %v938 = vld [vmem:[#allocation6 + $0x28] sm:$0xff]
        %v939 = vld [vmem:[#allocation6 + $0x30] sm:$0xff]
        %v940 = vld [vmem:[#allocation6 + $0x38] sm:$0xff]
        %v941 = vld [vmem:[#allocation6 + $0x40] sm:$0xff]
        %v942 = vld [vmem:[#allocation6 + $0x48] sm:$0xff]
        %v943 = vld [vmem:[#allocation6 + $0x50] sm:$0xff]
        %v944 = vld [vmem:[#allocation6 + $0x58] sm:$0xff]
        %v945 = vld [vmem:[#allocation6 + $0x60] sm:$0xff]
        %v946 = vld [vmem:[#allocation6 + $0x68] sm:$0xff]
        %v947 = vld [vmem:[#allocation6 + $0x70] sm:$0xff]
        %v948 = vld [vmem:[#allocation6 + $0x78] sm:$0xff]
        %v949 = vld [vmem:[%s10] sm:$0x1]
        %v951 = vperm.slane %v949, 0
        %953 = vmatpush.msra.mxu0 %v948
        %954 = vmatpush.msra.mxu0 %v947
        %955 = vmatpush.msra.mxu0 %v946
        %956 = vmatpush.msra.mxu0 %v945
        %957 = vmatpush.msra.mxu0 %v944
        %958 = vmatpush.msra.mxu0 %v943
        %959 = vmatpush.msra.mxu0 %v942
        %960 = vmatpush.msra.mxu0 %v941
        %961 = vmatpush.msra.mxu0 %v940
        %962 = vmatpush.msra.mxu0 %v939
        %963 = vmatpush.msra.mxu0 %v938
        %964 = vmatpush.msra.mxu0 %v937
        %965 = vmatpush.msra.mxu0 %v936
        %966 = vmatpush.msra.mxu0 %v935
        %967 = vmatpush.msra.mxu0 %v934
        %968 = vmatpush.msra.mxu0 %v933
        %969 = vmatmul.f32.gmra.mxu0 %v931
        %v970 = vpop.f32.mrf.mxu0
        %v971 = vadd.f32 %v951, %v970
        %972 = vmatmul.f32.gmra.mxu0 %v932
        %v973 = vpop.f32.mrf.mxu0
        %v974 = vadd.f32 %v951, %v973
        %975 = vdwg.mxu0
        %v976 = vmax.f32 %v971, 0.0
        %v977 = vmax.f32 %v974, 0.0
        %v978 = vld [vmem:[#allocation7] sm:$0xff]
        %v979 = vld [vmem:[#allocation7 + $0x8] sm:$0xff]
        %v980 = vld [vmem:[#allocation7 + $0x10] sm:$0xff]
        %v981 = vld [vmem:[#allocation7 + $0x18] sm:$0xff]
        %v982 = vld [vmem:[#allocation7 + $0x20] sm:$0xff]
        %v983 = vld [vmem:[#allocation7 + $0x28] sm:$0xff]
        %v984 = vld [vmem:[#allocation7 + $0x30] sm:$0xff]
        %v985 = vld [vmem:[#allocation7 + $0x38] sm:$0xff]
        %v986 = vld [vmem:[#allocation7 + $0x40] sm:$0xff]
        %v987 = vld [vmem:[#allocation7 + $0x48] sm:$0xff]
        %v988 = vld [vmem:[#allocation7 + $0x50] sm:$0xff]
        %v989 = vld [vmem:[#allocation7 + $0x58] sm:$0xff]
        %v990 = vld [vmem:[#allocation7 + $0x60] sm:$0xff]
        %v991 = vld [vmem:[#allocation7 + $0x68] sm:$0xff]
        %v992 = vld [vmem:[#allocation7 + $0x70] sm:$0xff]
        %v993 = vld [vmem:[#allocation7 + $0x78] sm:$0xff]
        %v994 = vld [vmem:[%s12] sm:$0x1]
        %v996 = vperm.slane %v994, 0
        %998 = vmatpush.msra.mxu0 %v993
        %999 = vmatpush.msra.mxu0 %v992
        %1000 = vmatpush.msra.mxu0 %v991
        %1001 = vmatpush.msra.mxu0 %v990
        %1002 = vmatpush.msra.mxu0 %v989
        %1003 = vmatpush.msra.mxu0 %v988
        %1004 = vmatpush.msra.mxu0 %v987
        %1005 = vmatpush.msra.mxu0 %v986
        %1006 = vmatpush.msra.mxu0 %v985
        %1007 = vmatpush.msra.mxu0 %v984
        %1008 = vmatpush.msra.mxu0 %v983
        %1009 = vmatpush.msra.mxu0 %v982
        %1010 = vmatpush.msra.mxu0 %v981
        %1011 = vmatpush.msra.mxu0 %v980
        %1012 = vmatpush.msra.mxu0 %v979
        %1013 = vmatpush.msra.mxu0 %v978
        %1014 = vmatmul.f32.gmra.mxu0 %v976
        %v1015 = vpop.f32.mrf.mxu0
        %v1016 = vadd.f32 %v996, %v1015
        %1017 = vmatmul.f32.gmra.mxu0 %v977
        %v1018 = vpop.f32.mrf.mxu0
        %v1019 = vadd.f32 %v996, %v1018
        %1020 = vdwg.mxu0
        %v1021 = vld [vmem:[%s2] sm:$0x3]
        %1022 = vset.pattern.permute.xlu0 0
        %1023 = vperm.xlu0 %1022, %v1021
        %v1024 = vpop.permute.xlu0 %1023
        %vm1025 = vcmp.lt.s32.totalorder %v784, %v1024
        %v1026 = vsel %vm1025, 1, 0
        %v1027 = vcvt.s32.f32 %v1026
        %v1028 = vperm.slane %v1027, 0
        %v1029 = vlaneseq
        %v1030 = vshrl.u32 %v1029, 7
        %1032 = vset.pattern.permute.xlu0 %v1030
        %1033 = vperm.xlu0 %1032, %v1028
        %v1034 = vpop.permute.xlu0 %1033
        %v1035 = vperm.slane %v1027, 1
        %v1036 = vlaneseq
        %v1037 = vshrl.u32 %v1036, 7
        %1039 = vset.pattern.permute.xlu0 %v1037
        %1040 = vperm.xlu0 %1039, %v1035
        %v1041 = vpop.permute.xlu0 %1040
        %v1042 = vmul.f32 %v1016, %v1034
        %v1043 = vmul.f32 %v1019, %v1041
        %1044 = vst [vmem:[%s722] sm:$0xff] %v1042
        %1045 = vst [vmem:[%s722 + $0x8] sm:$0xff] %v1043
        %p1046 = scmp.lt.s32.totalorder %s35, 1
        %s1047 = scalar_select %p1046, %s35, 1
        %s1048 = smul.addr %s1047, 2
        %s1049 = smul.addr %s1048, 8
        %s1050 = scalar_lea.vmem %s13, %s1049
        %p1051 = scmp.lt.s32.totalorder %s35, 1
        %s1052 = scalar_select %p1051, %s35, 1
        %s1053 = smul.addr %s1052, 2
        %s1054 = scalar_lea.vmem %s14, %s1053
        %p1055 = scmp.lt.s32.totalorder %s35, 1
        %s1056 = scalar_select %p1055, %s35, 1
        %s1057 = smul.addr %s1056, 2
        %s1058 = scalar_lea.vmem %s15, %s1057
        %p1059 = scmp.lt.s32.totalorder %s35, 1
        %s1060 = scalar_select %p1059, %s35, 1
        %s1061 = smul.addr %s1060, 2
        %s1062 = scalar_lea.vmem %s16, %s1061
        // Predicated region
        $region89: #{temos_forward.1} parent=71 // pred_check
          %p1063 = pneg %p361
        $region90: #{temos_forward.1} parent=71 // pred_check_branch
          %1065 = sbr.rel (%p1063) target = $region92
        $region91: #{temos_forward.1} parent=71 // pred_region
          _
        $region92: #{temos_forward.1} parent=71 // pred_fallthru
          _
        // Predicated region
        $region93: #{temos_forward.1} parent=71 // pred_check
          %p1066 = pneg %p387
        $region94: #{temos_forward.1} parent=71 // pred_check_branch
          %1068 = sbr.rel (%p1066) target = $region96
        $region95: #{temos_forward.1} parent=71 // pred_region
          _
        $region96: #{temos_forward.1} parent=71 // pred_fallthru
          _
        // Predicated region
        $region97: #{temos_forward.1} parent=71 // pred_check
          %p1069 = pneg %p413
        $region98: #{temos_forward.1} parent=71 // pred_check_branch
          %1071 = sbr.rel (%p1069) target = $region100
        $region99: #{temos_forward.1} parent=71 // pred_region
          _
        $region100: #{temos_forward.1} parent=71 // pred_fallthru
          _
        // Predicated region
        $region101: #{temos_forward.1} parent=71 // pred_check
          %p1072 = pneg %p439
        $region102: #{temos_forward.1} parent=71 // pred_check_branch
          %1074 = sbr.rel (%p1072) target = $region104
        $region103: #{temos_forward.1} parent=71 // pred_region
          _
        $region104: #{temos_forward.1} parent=71 // pred_fallthru
          _
      $region72: #{temos_forward.1} parent=5 // pred_fallthru
        _
      %p1075 = scmp.le.s32.totalorder 2, %s30
      // Predicated region
      $region105: #{temos_forward.1} parent=5 // pred_check
        %p1076 = pneg %p1075
      $region106: #{temos_forward.1} parent=5 // pred_check_branch
        %1078 = sbr.rel (%p1076) target = $region108
      $region107: #{temos_forward.1} parent=5 // pred_region
        %s1079 = ssub.s32 %s30, 2
        // Predicated region
        $region109: #{temos_forward.1} parent=107 // pred_check
          %p1080 = pneg %p367
        $region110: #{temos_forward.1} parent=107 // pred_check_branch
          %1082 = sbr.rel (%p1080) target = $region112
        $region111: #{temos_forward.1} parent=107 // pred_region
          %p1083 = scmp.lt.s32.totalorder %s36, 1
          %s1084 = scalar_select %p1083, %s36, 1
          %s1085 = smul.addr %s1084, 2
          %s1086 = smul.addr %s1085, 8
          %s1087 = scalar_lea.vmem %s13, %s1086
        $region112: #{temos_forward.1} parent=107 // pred_fallthru
          _
        // Predicated region
        $region113: #{temos_forward.1} parent=107 // pred_check
          %p1088 = pneg %p393
        $region114: #{temos_forward.1} parent=107 // pred_check_branch
          %1090 = sbr.rel (%p1088) target = $region116
        $region115: #{temos_forward.1} parent=107 // pred_region
          %p1091 = scmp.lt.s32.totalorder %s36, 1
          %s1092 = scalar_select %p1091, %s36, 1
          %s1093 = smul.addr %s1092, 2
          %s1094 = scalar_lea.vmem %s14, %s1093
        $region116: #{temos_forward.1} parent=107 // pred_fallthru
          _
        // Predicated region
        $region117: #{temos_forward.1} parent=107 // pred_check
          %p1095 = pneg %p419
        $region118: #{temos_forward.1} parent=107 // pred_check_branch
          %1097 = sbr.rel (%p1095) target = $region120
        $region119: #{temos_forward.1} parent=107 // pred_region
          %p1098 = scmp.lt.s32.totalorder %s36, 1
          %s1099 = scalar_select %p1098, %s36, 1
          %s1100 = smul.addr %s1099, 2
          %s1101 = scalar_lea.vmem %s15, %s1100
        $region120: #{temos_forward.1} parent=107 // pred_fallthru
          _
        // Predicated region
        $region121: #{temos_forward.1} parent=107 // pred_check
          %p1102 = pneg %p445
        $region122: #{temos_forward.1} parent=107 // pred_check_branch
          %1104 = sbr.rel (%p1102) target = $region124
        $region123: #{temos_forward.1} parent=107 // pred_region
          %p1105 = scmp.lt.s32.totalorder %s36, 1
          %s1106 = scalar_select %p1105, %s36, 1
          %s1107 = smul.addr %s1106, 2
          %s1108 = scalar_lea.vmem %s16, %s1107
        $region124: #{temos_forward.1} parent=107 // pred_fallthru
          _
      $region108: #{temos_forward.1} parent=5 // pred_fallthru
        _
    $region6: #{temos_forward.1} parent=1 // loop_footer
      %s34 = sadd.s32 1, %s30
    $region7: #{temos_forward.1} parent=1 // loop_footer_branch
      %29 = sbr.rel target = $region3
    $region8: #{temos_forward.1} parent=1 // loop_exit
      _
    %1109 = vsyncpa [#allocation3], 1
    %s1110 = scalar_lea.sflag [#allocation3], 1
    %1111 = vsyncpa %s1110, 1
    %1112 = vsyncpa [#allocation5], 1
    %s1113 = scalar_lea.sflag [#allocation5], 1
    %1114 = vsyncpa %s1113, 1
    %1115 = vsyncpa [#allocation8], 1

</llo_original>
